<compile_context>
chip_gen: v7x
topology: tpu7x:2x2x1
jax: 0.10.0
libtpu: 0.0.40
codegen_flags: <defaults>
</compile_context>

<pallas_src>
import jax
import jax.numpy as jnp
from jax.experimental import pallas as pl
from jax.experimental.pallas import tpu as pltpu

# ---------------- config (small, consistent with the module) ----------------
B = 2         # batch  (throughput scales ~free up to 8+ sublanes; latency unchanged)
T = 8         # sequence length
E = 32        # bert hidden_size == embedding_dim
H = 32        # GRU hidden_dim
OUT = 3       # output_dim
VOCAB = 100   # synthetic vocab for the BERT stand-in
TB = T * B    # time-major flattened rows
G3 = 3 * H    # one direction's r|z|n gate block (96 lanes)
# n_layers = 1, bidirectional = True -> GRU internal dropout is 0 (n_layers < 2)

# -------- packed parameter blob layout (last dim = 6H = 192 lanes) ----------
ROW_WIH = 0                   # rows [0,  E)     : W_ih   fwd at lanes [0:3H), bwd at [3H:6H)
ROW_WHH = E                   # rows [E,  E+H)   : W_hh   fwd at lanes [0:3H), bwd at [3H:6H)
ROW_BIN = E + H               # row   64         : fused input bias  b_ih + [b_hr, b_hz, 0]
ROW_BHN = ROW_BIN + 1         # row   65         : b_hn   fwd at lanes [0:H), bwd at [H:2H)
ROW_WOUT = 72                 # rows [72, 72+2H) : W_out (2H, OUT) at lanes [0:OUT)
ROW_BOUT = ROW_WOUT + 2 * H   # row   136        : b_out at lanes [0:OUT)
BLOB_ROWS = 144               # padded to a sublane multiple


# --------------------------- fused forward kernel ----------------------------
def fused_forward_kernel(ids_ref, emb_ref, blob_ref, o_ref):
    """ids_ref: (T*B, 1) int32 time-major ids; emb_ref: (VOCAB, E);
    blob_ref: (BLOB_ROWS, 6H) packed params; o_ref: (B, OUT)."""
    # ---- BERT stand-in: embedding lookup fused in-kernel (one-hot @ table, 1 MXU push) ----
    # TODO(synk): the frozen pretrained BERT encoder bert(text)[0] is substituted by this
    # deterministic lookup with the same (B, T, E)-shaped output.
    ids = ids_ref[...]                                               # (TB, 1) int32
    vocab_iota = jax.lax.broadcasted_iota(jnp.int32, (TB, VOCAB), 1)
    onehot = (vocab_iota == ids).astype(jnp.float32)                 # (TB, VOCAB)
    x = jnp.dot(onehot, emb_ref[...], preferred_element_type=jnp.float32)   # (TB, E)

    # ---- unpack the parameter blob (static, one-time slices) ----
    w_ih_all = blob_ref[ROW_WIH:ROW_WIH + E, :]                      # (E, 6H)
    w_hh_f = blob_ref[ROW_WHH:ROW_WHH + H, 0:G3]                     # (H, 3H)
    w_hh_b = blob_ref[ROW_WHH:ROW_WHH + H, G3:2 * G3]                # (H, 3H)
    b_in_all = blob_ref[ROW_BIN:ROW_BIN + 1, :]                      # (1, 6H)
    bhn_f = jnp.broadcast_to(blob_ref[ROW_BHN:ROW_BHN + 1, 0:H], (B, H))      # hoisted
    bhn_b = jnp.broadcast_to(blob_ref[ROW_BHN:ROW_BHN + 1, H:2 * H], (B, H))  # broadcasts
    w_out_f = blob_ref[ROW_WOUT:ROW_WOUT + H, 0:OUT]                 # (H, OUT)
    w_out_b = blob_ref[ROW_WOUT + H:ROW_WOUT + 2 * H, 0:OUT]         # (H, OUT)
    b_out = blob_ref[ROW_BOUT:ROW_BOUT + 1, 0:OUT]                   # (1, OUT)

    # ---- hoisted input projection: one dot covers all timesteps, gates, directions ----
    gi_all = jnp.dot(x, w_ih_all, preferred_element_type=jnp.float32) + b_in_all
    gi_f = gi_all[:, 0:G3]                                           # (TB, 3H)
    gi_b = gi_all[:, G3:2 * G3]                                      # (TB, 3H)

    # ---- bidirectional GRU recurrence: both directions interleaved per timestep ----
    h_f = jnp.zeros((B, H), jnp.float32)
    h_b = jnp.zeros((B, H), jnp.float32)
    two_h = 2 * H
    for s in range(T):                                               # trace-time unrolled
        rf = s * B                                                   # fwd consumes time s
        rb = (T - 1 - s) * B                                         # bwd consumes time T-1-s
        i_f = gi_f[rf:rf + B, :]                                     # (B, 3H)
        i_b = gi_b[rb:rb + B, :]
        # one fused (B,H)x(H,3H) recurrent MXU push per direction (96 output lanes)
        g_f = jnp.dot(h_f, w_hh_f, preferred_element_type=jnp.float32)
        g_b = jnp.dot(h_b, w_hh_b, preferred_element_type=jnp.float32)
        # r|z slab -> a single sigmoid per direction; n slab -> a single tanh
        rz_f = jax.nn.sigmoid(i_f[:, :two_h] + g_f[:, :two_h])
        rz_b = jax.nn.sigmoid(i_b[:, :two_h] + g_b[:, :two_h])
        n_f = jnp.tanh(i_f[:, two_h:] + rz_f[:, :H] * (g_f[:, two_h:] + bhn_f))
        n_b = jnp.tanh(i_b[:, two_h:] + rz_b[:, :H] * (g_b[:, two_h:] + bhn_b))
        z_f = rz_f[:, H:]
        z_b = rz_b[:, H:]
        h_f = n_f + z_f * (h_f - n_f)                                # == (1-z)*n + z*h
        h_b = n_b + z_b * (h_b - n_b)

    # ---- output Linear on cat(h_fwd, h_bwd); dropout == identity in eval mode ----
    o_ref[...] = (jnp.dot(h_f, w_out_f, preferred_element_type=jnp.float32)
                  + jnp.dot(h_b, w_out_b, preferred_element_type=jnp.float32)
                  + b_out)


# ------------------------------ parameter setup ------------------------------
def init_raw_params(key):
    ks = jax.random.split(key, 11)
    s = 0.1

    def rnd(k, shape):
        return s * jax.random.normal(k, shape, jnp.float32)

    return {
        "emb":    rnd(ks[0], (VOCAB, E)),      # BERT stand-in embedding table
        # per-direction GRU weights, gate order r|z|n along the last axis (pre-transposed)
        "w_ih_f": rnd(ks[1], (E, G3)),
        "w_hh_f": rnd(ks[2], (H, G3)),
        "b_ih_f": rnd(ks[3], (G3,)),
        "b_hh_f": rnd(ks[4], (G3,)),
        "w_ih_b": rnd(ks[5], (E, G3)),
        "w_hh_b": rnd(ks[6], (H, G3)),
        "b_ih_b": rnd(ks[7], (G3,)),
        "b_hh_b": rnd(ks[8], (G3,)),
        # output Linear: rows [0:H] multiply h_fwd, rows [H:2H] multiply h_bwd
        "w_out":  rnd(ks[9], (2 * H, OUT)),
        "b_out":  rnd(ks[10], (OUT,)),
    }


def pack_params(raw):
    """Fold biases and pack every parameter into one (BLOB_ROWS, 6H) VMEM-resident blob."""
    def fused_input_bias(b_ih, b_hh):
        # b_hr, b_hz fold into the (hoisted) input-projection bias; b_hn cannot
        # (it sits inside the r-gated term of the n gate in PyTorch's GRU).
        return jnp.concatenate([b_ih[:2 * H] + b_hh[:2 * H], b_ih[2 * H:]])

    blob = jnp.zeros((BLOB_ROWS, 2 * G3), jnp.float32)
    blob = blob.at[ROW_WIH:ROW_WIH + E, 0:G3].set(raw["w_ih_f"])
    blob = blob.at[ROW_WIH:ROW_WIH + E, G3:2 * G3].set(raw["w_ih_b"])
    blob = blob.at[ROW_WHH:ROW_WHH + H, 0:G3].set(raw["w_hh_f"])
    blob = blob.at[ROW_WHH:ROW_WHH + H, G3:2 * G3].set(raw["w_hh_b"])
    blob = blob.at[ROW_BIN, 0:G3].set(fused_input_bias(raw["b_ih_f"], raw["b_hh_f"]))
    blob = blob.at[ROW_BIN, G3:2 * G3].set(fused_input_bias(raw["b_ih_b"], raw["b_hh_b"]))
    blob = blob.at[ROW_BHN, 0:H].set(raw["b_hh_f"][2 * H:])
    blob = blob.at[ROW_BHN, H:2 * H].set(raw["b_hh_b"][2 * H:])
    blob = blob.at[ROW_WOUT:ROW_WOUT + 2 * H, 0:OUT].set(raw["w_out"])
    blob = blob.at[ROW_BOUT, 0:OUT].set(raw["b_out"])
    return {"emb": raw["emb"], "blob": blob}


# --------------------------------- forward ----------------------------------
def bert_sentiment_forward(text, packed):
    # time-major ids so each timestep is a contiguous B-row slice of x inside the kernel
    ids_tm = text.T.reshape(TB, 1).astype(jnp.int32)
    return pl.pallas_call(
        fused_forward_kernel,
        out_shape=jax.ShapeDtypeStruct((B, OUT), jnp.float32),
        in_specs=[pl.BlockSpec(memory_space=pltpu.MemorySpace.VMEM)] * 3,
        out_specs=pl.BlockSpec(memory_space=pltpu.MemorySpace.VMEM),
    )(ids_tm, packed["emb"], packed["blob"])


# ------------------------- pure-JAX reference (check) ------------------------
def reference_forward(text, raw):
    x = raw["emb"][text]                                   # (B, T, E) "bert" activations
    hp = jax.lax.Precision.HIGHEST

    def run(w_ih, w_hh, b_ih, b_hh, reverse):
        h = jnp.zeros((B, H), jnp.float32)
        order = range(T - 1, -1, -1) if reverse else range(T)
        for t in order:
            gi = jnp.dot(x[:, t, :], w_ih, precision=hp) + b_ih
            gh = jnp.dot(h, w_hh, precision=hp) + b_hh
            r = jax.nn.sigmoid(gi[:, :H] + gh[:, :H])
            z = jax.nn.sigmoid(gi[:, H:2 * H] + gh[:, H:2 * H])
            n = jnp.tanh(gi[:, 2 * H:] + r * gh[:, 2 * H:])
            h = (1.0 - z) * n + z * h
        return h

    h_f = run(raw["w_ih_f"], raw["w_hh_f"], raw["b_ih_f"], raw["b_hh_f"], False)
    h_b = run(raw["w_ih_b"], raw["w_hh_b"], raw["b_ih_b"], raw["b_hh_b"], True)
    hidden = jnp.concatenate([h_f, h_b], axis=1)           # dropout == identity in eval
    return jnp.dot(hidden, raw["w_out"], precision=hp) + raw["b_out"]


# ----------------------------------- main ------------------------------------
if __name__ == "__main__":
    key = jax.random.PRNGKey(0)
    pkey, tkey = jax.random.split(key)
    raw = init_raw_params(pkey)
    packed = pack_params(raw)

    # `text`: token ids, shape (batch, seq) as the module's forward implies
    text = jax.random.randint(tkey, (B, T), 0, VOCAB, dtype=jnp.int32)

    forward = jax.jit(bert_sentiment_forward)
    out = forward(text, packed)
    jax.block_until_ready(out)
    assert out.shape == (B, OUT)

    ref = reference_forward(text, raw)
    assert jnp.allclose(out, ref, atol=2e-2, rtol=2e-2), (out, ref)
    print("KERNEL_OK")
</pallas_src>

<mosaic_0001>
module attributes {stable_mosaic.version = 11 : i64} {
  func.func @fused_forward_kernel(%arg0: memref<16x1xi32, #tpu.memory_space<vmem>>, %arg1: memref<100x32xf32, #tpu.memory_space<vmem>>, %arg2: memref<144x192xf32, #tpu.memory_space<vmem>>, %arg3: memref<2x3xf32, #tpu.memory_space<vmem>>) attributes {dimension_semantics = [], scalar_prefetch = 0 : i64, scratch_operands = 0 : i64, tpu.core_type = #tpu.core_type<tc>} {
    %c0 = arith.constant 0 : index
    %c0_0 = arith.constant 0 : index
    %0 = vector.load %arg0[%c0, %c0_0] : memref<16x1xi32, #tpu.memory_space<vmem>>, vector<16x1xi32>
    %1 = tpu.iota {dimensions = array<i32: 1>} : vector<16x100xi32>
    %2 = vector.broadcast %0 : vector<16x1xi32> to vector<16x100xi32>
    %3 = arith.cmpi eq, %1, %2 : vector<16x100xi32>
    %4 = arith.extui %3 : vector<16x100xi1> to vector<16x100xi32>
    %5 = arith.sitofp %4 : vector<16x100xi32> to vector<16x100xf32>
    %c0_1 = arith.constant 0 : index
    %c0_2 = arith.constant 0 : index
    %6 = vector.load %arg1[%c0_1, %c0_2] : memref<100x32xf32, #tpu.memory_space<vmem>>, vector<100x32xf32>
    %cst = arith.constant dense<0.000000e+00> : vector<16x32xf32>
    %7 = tpu.matmul %5, %6, %cst {dimension_numbers = #tpu.dot_dimension_numbers<[1], [0], [0], [1], [0, 0, 1, 1], [], []>} : vector<16x100xf32>, vector<100x32xf32>, vector<16x32xf32> -> vector<16x32xf32>
    %c0_3 = arith.constant 0 : index
    %c0_4 = arith.constant 0 : index
    %8 = vector.load %arg2[%c0_3, %c0_4] : memref<144x192xf32, #tpu.memory_space<vmem>>, vector<32x192xf32>
    %c32 = arith.constant 32 : index
    %c0_5 = arith.constant 0 : index
    %9 = vector.load %arg2[%c32, %c0_5] : memref<144x192xf32, #tpu.memory_space<vmem>>, vector<32x96xf32>
    %c32_6 = arith.constant 32 : index
    %c96 = arith.constant 96 : index
    %10 = vector.load %arg2[%c32_6, %c96] : memref<144x192xf32, #tpu.memory_space<vmem>>, vector<32x96xf32>
    %c64 = arith.constant 64 : index
    %c0_7 = arith.constant 0 : index
    %11 = vector.load %arg2[%c64, %c0_7] : memref<144x192xf32, #tpu.memory_space<vmem>>, vector<1x192xf32>
    %c65 = arith.constant 65 : index
    %c0_8 = arith.constant 0 : index
    %12 = vector.load %arg2[%c65, %c0_8] : memref<144x192xf32, #tpu.memory_space<vmem>>, vector<1x32xf32>
    %13 = vector.shape_cast %12 : vector<1x32xf32> to vector<1x32xf32>
    %14 = vector.broadcast %13 : vector<1x32xf32> to vector<2x32xf32>
    %c65_9 = arith.constant 65 : index
    %c32_10 = arith.constant 32 : index
    %15 = vector.load %arg2[%c65_9, %c32_10] : memref<144x192xf32, #tpu.memory_space<vmem>>, vector<1x32xf32>
    %16 = vector.shape_cast %15 : vector<1x32xf32> to vector<1x32xf32>
    %17 = vector.broadcast %16 : vector<1x32xf32> to vector<2x32xf32>
    %c72 = arith.constant 72 : index
    %c0_11 = arith.constant 0 : index
    %18 = vector.load %arg2[%c72, %c0_11] : memref<144x192xf32, #tpu.memory_space<vmem>>, vector<32x3xf32>
    %c104 = arith.constant 104 : index
    %c0_12 = arith.constant 0 : index
    %19 = vector.load %arg2[%c104, %c0_12] : memref<144x192xf32, #tpu.memory_space<vmem>>, vector<32x3xf32>
    %c136 = arith.constant 136 : index
    %c0_13 = arith.constant 0 : index
    %20 = vector.load %arg2[%c136, %c0_13] : memref<144x192xf32, #tpu.memory_space<vmem>>, vector<1x3xf32>
    %cst_14 = arith.constant dense<0.000000e+00> : vector<16x192xf32>
    %21 = tpu.matmul %7, %8, %cst_14 {dimension_numbers = #tpu.dot_dimension_numbers<[1], [0], [0], [1], [0, 0, 1, 1], [], []>} : vector<16x32xf32>, vector<32x192xf32>, vector<16x192xf32> -> vector<16x192xf32>
    %22 = vector.broadcast %11 : vector<1x192xf32> to vector<16x192xf32>
    %23 = arith.addf %21, %22 : vector<16x192xf32>
    %24 = vector.extract_strided_slice %23 {offsets = [0, 0], sizes = [16, 96], strides = [1, 1]} : vector<16x192xf32> to vector<16x96xf32>
    %25 = vector.extract_strided_slice %23 {offsets = [0, 96], sizes = [16, 96], strides = [1, 1]} : vector<16x192xf32> to vector<16x96xf32>
    %cst_15 = arith.constant 0.000000e+00 : f32
    %26 = vector.broadcast %cst_15 : f32 to vector<2x32xf32>
    %cst_16 = arith.constant 0.000000e+00 : f32
    %27 = vector.broadcast %cst_16 : f32 to vector<2x32xf32>
    %28 = vector.extract_strided_slice %24 {offsets = [0, 0], sizes = [2, 96], strides = [1, 1]} : vector<16x96xf32> to vector<2x96xf32>
    %29 = vector.extract_strided_slice %25 {offsets = [14, 0], sizes = [2, 96], strides = [1, 1]} : vector<16x96xf32> to vector<2x96xf32>
    %cst_17 = arith.constant dense<0.000000e+00> : vector<2x96xf32>
    %30 = tpu.matmul %26, %9, %cst_17 {dimension_numbers = #tpu.dot_dimension_numbers<[1], [0], [0], [1], [0, 0, 1, 1], [], []>} : vector<2x32xf32>, vector<32x96xf32>, vector<2x96xf32> -> vector<2x96xf32>
    %cst_18 = arith.constant dense<0.000000e+00> : vector<2x96xf32>
    %31 = tpu.matmul %27, %10, %cst_18 {dimension_numbers = #tpu.dot_dimension_numbers<[1], [0], [0], [1], [0, 0, 1, 1], [], []>} : vector<2x32xf32>, vector<32x96xf32>, vector<2x96xf32> -> vector<2x96xf32>
    %32 = vector.extract_strided_slice %28 {offsets = [0, 0], sizes = [2, 64], strides = [1, 1]} : vector<2x96xf32> to vector<2x64xf32>
    %33 = vector.extract_strided_slice %30 {offsets = [0, 0], sizes = [2, 64], strides = [1, 1]} : vector<2x96xf32> to vector<2x64xf32>
    %34 = arith.addf %32, %33 : vector<2x64xf32>
    %35 = arith.negf %34 : vector<2x64xf32>
    %36 = math.exp %35 : vector<2x64xf32>
    %cst_19 = arith.constant 1.000000e+00 : f32
    %37 = vector.broadcast %cst_19 : f32 to vector<2x64xf32>
    %38 = arith.addf %37, %36 : vector<2x64xf32>
    %39 = arith.divf %37, %38 : vector<2x64xf32>
    %40 = vector.extract_strided_slice %29 {offsets = [0, 0], sizes = [2, 64], strides = [1, 1]} : vector<2x96xf32> to vector<2x64xf32>
    %41 = vector.extract_strided_slice %31 {offsets = [0, 0], sizes = [2, 64], strides = [1, 1]} : vector<2x96xf32> to vector<2x64xf32>
    %42 = arith.addf %40, %41 : vector<2x64xf32>
    %43 = arith.negf %42 : vector<2x64xf32>
    %44 = math.exp %43 : vector<2x64xf32>
    %cst_20 = arith.constant 1.000000e+00 : f32
    %45 = vector.broadcast %cst_20 : f32 to vector<2x64xf32>
    %46 = arith.addf %45, %44 : vector<2x64xf32>
    %47 = arith.divf %45, %46 : vector<2x64xf32>
    %48 = vector.extract_strided_slice %28 {offsets = [0, 64], sizes = [2, 32], strides = [1, 1]} : vector<2x96xf32> to vector<2x32xf32>
    %49 = vector.extract_strided_slice %39 {offsets = [0, 0], sizes = [2, 32], strides = [1, 1]} : vector<2x64xf32> to vector<2x32xf32>
    %50 = vector.extract_strided_slice %30 {offsets = [0, 64], sizes = [2, 32], strides = [1, 1]} : vector<2x96xf32> to vector<2x32xf32>
    %51 = arith.addf %50, %14 : vector<2x32xf32>
    %52 = arith.mulf %49, %51 : vector<2x32xf32>
    %53 = arith.addf %48, %52 : vector<2x32xf32>
    %54 = math.tanh %53 : vector<2x32xf32>
    %55 = vector.extract_strided_slice %29 {offsets = [0, 64], sizes = [2, 32], strides = [1, 1]} : vector<2x96xf32> to vector<2x32xf32>
    %56 = vector.extract_strided_slice %47 {offsets = [0, 0], sizes = [2, 32], strides = [1, 1]} : vector<2x64xf32> to vector<2x32xf32>
    %57 = vector.extract_strided_slice %31 {offsets = [0, 64], sizes = [2, 32], strides = [1, 1]} : vector<2x96xf32> to vector<2x32xf32>
    %58 = arith.addf %57, %17 : vector<2x32xf32>
    %59 = arith.mulf %56, %58 : vector<2x32xf32>
    %60 = arith.addf %55, %59 : vector<2x32xf32>
    %61 = math.tanh %60 : vector<2x32xf32>
    %62 = vector.extract_strided_slice %39 {offsets = [0, 32], sizes = [2, 32], strides = [1, 1]} : vector<2x64xf32> to vector<2x32xf32>
    %63 = vector.extract_strided_slice %47 {offsets = [0, 32], sizes = [2, 32], strides = [1, 1]} : vector<2x64xf32> to vector<2x32xf32>
    %64 = arith.subf %26, %54 : vector<2x32xf32>
    %65 = arith.mulf %62, %64 : vector<2x32xf32>
    %66 = arith.addf %54, %65 : vector<2x32xf32>
    %67 = arith.subf %27, %61 : vector<2x32xf32>
    %68 = arith.mulf %63, %67 : vector<2x32xf32>
    %69 = arith.addf %61, %68 : vector<2x32xf32>
    %70 = vector.extract_strided_slice %24 {offsets = [2, 0], sizes = [2, 96], strides = [1, 1]} : vector<16x96xf32> to vector<2x96xf32>
    %71 = vector.extract_strided_slice %25 {offsets = [12, 0], sizes = [2, 96], strides = [1, 1]} : vector<16x96xf32> to vector<2x96xf32>
    %cst_21 = arith.constant dense<0.000000e+00> : vector<2x96xf32>
    %72 = tpu.matmul %66, %9, %cst_21 {dimension_numbers = #tpu.dot_dimension_numbers<[1], [0], [0], [1], [0, 0, 1, 1], [], []>} : vector<2x32xf32>, vector<32x96xf32>, vector<2x96xf32> -> vector<2x96xf32>
    %cst_22 = arith.constant dense<0.000000e+00> : vector<2x96xf32>
    %73 = tpu.matmul %69, %10, %cst_22 {dimension_numbers = #tpu.dot_dimension_numbers<[1], [0], [0], [1], [0, 0, 1, 1], [], []>} : vector<2x32xf32>, vector<32x96xf32>, vector<2x96xf32> -> vector<2x96xf32>
    %74 = vector.extract_strided_slice %70 {offsets = [0, 0], sizes = [2, 64], strides = [1, 1]} : vector<2x96xf32> to vector<2x64xf32>
    %75 = vector.extract_strided_slice %72 {offsets = [0, 0], sizes = [2, 64], strides = [1, 1]} : vector<2x96xf32> to vector<2x64xf32>
    %76 = arith.addf %74, %75 : vector<2x64xf32>
    %77 = arith.negf %76 : vector<2x64xf32>
    %78 = math.exp %77 : vector<2x64xf32>
    %cst_23 = arith.constant 1.000000e+00 : f32
    %79 = vector.broadcast %cst_23 : f32 to vector<2x64xf32>
    %80 = arith.addf %79, %78 : vector<2x64xf32>
    %81 = arith.divf %79, %80 : vector<2x64xf32>
    %82 = vector.extract_strided_slice %71 {offsets = [0, 0], sizes = [2, 64], strides = [1, 1]} : vector<2x96xf32> to vector<2x64xf32>
    %83 = vector.extract_strided_slice %73 {offsets = [0, 0], sizes = [2, 64], strides = [1, 1]} : vector<2x96xf32> to vector<2x64xf32>
    %84 = arith.addf %82, %83 : vector<2x64xf32>
    %85 = arith.negf %84 : vector<2x64xf32>
    %86 = math.exp %85 : vector<2x64xf32>
    %cst_24 = arith.constant 1.000000e+00 : f32
    %87 = vector.broadcast %cst_24 : f32 to vector<2x64xf32>
    %88 = arith.addf %87, %86 : vector<2x64xf32>
    %89 = arith.divf %87, %88 : vector<2x64xf32>
    %90 = vector.extract_strided_slice %70 {offsets = [0, 64], sizes = [2, 32], strides = [1, 1]} : vector<2x96xf32> to vector<2x32xf32>
    %91 = vector.extract_strided_slice %81 {offsets = [0, 0], sizes = [2, 32], strides = [1, 1]} : vector<2x64xf32> to vector<2x32xf32>
    %92 = vector.extract_strided_slice %72 {offsets = [0, 64], sizes = [2, 32], strides = [1, 1]} : vector<2x96xf32> to vector<2x32xf32>
    %93 = arith.addf %92, %14 : vector<2x32xf32>
    %94 = arith.mulf %91, %93 : vector<2x32xf32>
    %95 = arith.addf %90, %94 : vector<2x32xf32>
    %96 = math.tanh %95 : vector<2x32xf32>
    %97 = vector.extract_strided_slice %71 {offsets = [0, 64], sizes = [2, 32], strides = [1, 1]} : vector<2x96xf32> to vector<2x32xf32>
    %98 = vector.extract_strided_slice %89 {offsets = [0, 0], sizes = [2, 32], strides = [1, 1]} : vector<2x64xf32> to vector<2x32xf32>
    %99 = vector.extract_strided_slice %73 {offsets = [0, 64], sizes = [2, 32], strides = [1, 1]} : vector<2x96xf32> to vector<2x32xf32>
    %100 = arith.addf %99, %17 : vector<2x32xf32>
    %101 = arith.mulf %98, %100 : vector<2x32xf32>
    %102 = arith.addf %97, %101 : vector<2x32xf32>
    %103 = math.tanh %102 : vector<2x32xf32>
    %104 = vector.extract_strided_slice %81 {offsets = [0, 32], sizes = [2, 32], strides = [1, 1]} : vector<2x64xf32> to vector<2x32xf32>
    %105 = vector.extract_strided_slice %89 {offsets = [0, 32], sizes = [2, 32], strides = [1, 1]} : vector<2x64xf32> to vector<2x32xf32>
    %106 = arith.subf %66, %96 : vector<2x32xf32>
    %107 = arith.mulf %104, %106 : vector<2x32xf32>
    %108 = arith.addf %96, %107 : vector<2x32xf32>
    %109 = arith.subf %69, %103 : vector<2x32xf32>
    %110 = arith.mulf %105, %109 : vector<2x32xf32>
    %111 = arith.addf %103, %110 : vector<2x32xf32>
    %112 = vector.extract_strided_slice %24 {offsets = [4, 0], sizes = [2, 96], strides = [1, 1]} : vector<16x96xf32> to vector<2x96xf32>
    %113 = vector.extract_strided_slice %25 {offsets = [10, 0], sizes = [2, 96], strides = [1, 1]} : vector<16x96xf32> to vector<2x96xf32>
    %cst_25 = arith.constant dense<0.000000e+00> : vector<2x96xf32>
    %114 = tpu.matmul %108, %9, %cst_25 {dimension_numbers = #tpu.dot_dimension_numbers<[1], [0], [0], [1], [0, 0, 1, 1], [], []>} : vector<2x32xf32>, vector<32x96xf32>, vector<2x96xf32> -> vector<2x96xf32>
    %cst_26 = arith.constant dense<0.000000e+00> : vector<2x96xf32>
    %115 = tpu.matmul %111, %10, %cst_26 {dimension_numbers = #tpu.dot_dimension_numbers<[1], [0], [0], [1], [0, 0, 1, 1], [], []>} : vector<2x32xf32>, vector<32x96xf32>, vector<2x96xf32> -> vector<2x96xf32>
    %116 = vector.extract_strided_slice %112 {offsets = [0, 0], sizes = [2, 64], strides = [1, 1]} : vector<2x96xf32> to vector<2x64xf32>
    %117 = vector.extract_strided_slice %114 {offsets = [0, 0], sizes = [2, 64], strides = [1, 1]} : vector<2x96xf32> to vector<2x64xf32>
    %118 = arith.addf %116, %117 : vector<2x64xf32>
    %119 = arith.negf %118 : vector<2x64xf32>
    %120 = math.exp %119 : vector<2x64xf32>
    %cst_27 = arith.constant 1.000000e+00 : f32
    %121 = vector.broadcast %cst_27 : f32 to vector<2x64xf32>
    %122 = arith.addf %121, %120 : vector<2x64xf32>
    %123 = arith.divf %121, %122 : vector<2x64xf32>
    %124 = vector.extract_strided_slice %113 {offsets = [0, 0], sizes = [2, 64], strides = [1, 1]} : vector<2x96xf32> to vector<2x64xf32>
    %125 = vector.extract_strided_slice %115 {offsets = [0, 0], sizes = [2, 64], strides = [1, 1]} : vector<2x96xf32> to vector<2x64xf32>
    %126 = arith.addf %124, %125 : vector<2x64xf32>
    %127 = arith.negf %126 : vector<2x64xf32>
    %128 = math.exp %127 : vector<2x64xf32>
    %cst_28 = arith.constant 1.000000e+00 : f32
    %129 = vector.broadcast %cst_28 : f32 to vector<2x64xf32>
    %130 = arith.addf %129, %128 : vector<2x64xf32>
    %131 = arith.divf %129, %130 : vector<2x64xf32>
    %132 = vector.extract_strided_slice %112 {offsets = [0, 64], sizes = [2, 32], strides = [1, 1]} : vector<2x96xf32> to vector<2x32xf32>
    %133 = vector.extract_strided_slice %123 {offsets = [0, 0], sizes = [2, 32], strides = [1, 1]} : vector<2x64xf32> to vector<2x32xf32>
    %134 = vector.extract_strided_slice %114 {offsets = [0, 64], sizes = [2, 32], strides = [1, 1]} : vector<2x96xf32> to vector<2x32xf32>
    %135 = arith.addf %134, %14 : vector<2x32xf32>
    %136 = arith.mulf %133, %135 : vector<2x32xf32>
    %137 = arith.addf %132, %136 : vector<2x32xf32>
    %138 = math.tanh %137 : vector<2x32xf32>
    %139 = vector.extract_strided_slice %113 {offsets = [0, 64], sizes = [2, 32], strides = [1, 1]} : vector<2x96xf32> to vector<2x32xf32>
    %140 = vector.extract_strided_slice %131 {offsets = [0, 0], sizes = [2, 32], strides = [1, 1]} : vector<2x64xf32> to vector<2x32xf32>
    %141 = vector.extract_strided_slice %115 {offsets = [0, 64], sizes = [2, 32], strides = [1, 1]} : vector<2x96xf32> to vector<2x32xf32>
    %142 = arith.addf %141, %17 : vector<2x32xf32>
    %143 = arith.mulf %140, %142 : vector<2x32xf32>
    %144 = arith.addf %139, %143 : vector<2x32xf32>
    %145 = math.tanh %144 : vector<2x32xf32>
    %146 = vector.extract_strided_slice %123 {offsets = [0, 32], sizes = [2, 32], strides = [1, 1]} : vector<2x64xf32> to vector<2x32xf32>
    %147 = vector.extract_strided_slice %131 {offsets = [0, 32], sizes = [2, 32], strides = [1, 1]} : vector<2x64xf32> to vector<2x32xf32>
    %148 = arith.subf %108, %138 : vector<2x32xf32>
    %149 = arith.mulf %146, %148 : vector<2x32xf32>
    %150 = arith.addf %138, %149 : vector<2x32xf32>
    %151 = arith.subf %111, %145 : vector<2x32xf32>
    %152 = arith.mulf %147, %151 : vector<2x32xf32>
    %153 = arith.addf %145, %152 : vector<2x32xf32>
    %154 = vector.extract_strided_slice %24 {offsets = [6, 0], sizes = [2, 96], strides = [1, 1]} : vector<16x96xf32> to vector<2x96xf32>
    %155 = vector.extract_strided_slice %25 {offsets = [8, 0], sizes = [2, 96], strides = [1, 1]} : vector<16x96xf32> to vector<2x96xf32>
    %cst_29 = arith.constant dense<0.000000e+00> : vector<2x96xf32>
    %156 = tpu.matmul %150, %9, %cst_29 {dimension_numbers = #tpu.dot_dimension_numbers<[1], [0], [0], [1], [0, 0, 1, 1], [], []>} : vector<2x32xf32>, vector<32x96xf32>, vector<2x96xf32> -> vector<2x96xf32>
    %cst_30 = arith.constant dense<0.000000e+00> : vector<2x96xf32>
    %157 = tpu.matmul %153, %10, %cst_30 {dimension_numbers = #tpu.dot_dimension_numbers<[1], [0], [0], [1], [0, 0, 1, 1], [], []>} : vector<2x32xf32>, vector<32x96xf32>, vector<2x96xf32> -> vector<2x96xf32>
    %158 = vector.extract_strided_slice %154 {offsets = [0, 0], sizes = [2, 64], strides = [1, 1]} : vector<2x96xf32> to vector<2x64xf32>
    %159 = vector.extract_strided_slice %156 {offsets = [0, 0], sizes = [2, 64], strides = [1, 1]} : vector<2x96xf32> to vector<2x64xf32>
    %160 = arith.addf %158, %159 : vector<2x64xf32>
    %161 = arith.negf %160 : vector<2x64xf32>
    %162 = math.exp %161 : vector<2x64xf32>
    %cst_31 = arith.constant 1.000000e+00 : f32
    %163 = vector.broadcast %cst_31 : f32 to vector<2x64xf32>
    %164 = arith.addf %163, %162 : vector<2x64xf32>
    %165 = arith.divf %163, %164 : vector<2x64xf32>
    %166 = vector.extract_strided_slice %155 {offsets = [0, 0], sizes = [2, 64], strides = [1, 1]} : vector<2x96xf32> to vector<2x64xf32>
    %167 = vector.extract_strided_slice %157 {offsets = [0, 0], sizes = [2, 64], strides = [1, 1]} : vector<2x96xf32> to vector<2x64xf32>
    %168 = arith.addf %166, %167 : vector<2x64xf32>
    %169 = arith.negf %168 : vector<2x64xf32>
    %170 = math.exp %169 : vector<2x64xf32>
    %cst_32 = arith.constant 1.000000e+00 : f32
    %171 = vector.broadcast %cst_32 : f32 to vector<2x64xf32>
    %172 = arith.addf %171, %170 : vector<2x64xf32>
    %173 = arith.divf %171, %172 : vector<2x64xf32>
    %174 = vector.extract_strided_slice %154 {offsets = [0, 64], sizes = [2, 32], strides = [1, 1]} : vector<2x96xf32> to vector<2x32xf32>
    %175 = vector.extract_strided_slice %165 {offsets = [0, 0], sizes = [2, 32], strides = [1, 1]} : vector<2x64xf32> to vector<2x32xf32>
    %176 = vector.extract_strided_slice %156 {offsets = [0, 64], sizes = [2, 32], strides = [1, 1]} : vector<2x96xf32> to vector<2x32xf32>
    %177 = arith.addf %176, %14 : vector<2x32xf32>
    %178 = arith.mulf %175, %177 : vector<2x32xf32>
    %179 = arith.addf %174, %178 : vector<2x32xf32>
    %180 = math.tanh %179 : vector<2x32xf32>
    %181 = vector.extract_strided_slice %155 {offsets = [0, 64], sizes = [2, 32], strides = [1, 1]} : vector<2x96xf32> to vector<2x32xf32>
    %182 = vector.extract_strided_slice %173 {offsets = [0, 0], sizes = [2, 32], strides = [1, 1]} : vector<2x64xf32> to vector<2x32xf32>
    %183 = vector.extract_strided_slice %157 {offsets = [0, 64], sizes = [2, 32], strides = [1, 1]} : vector<2x96xf32> to vector<2x32xf32>
    %184 = arith.addf %183, %17 : vector<2x32xf32>
    %185 = arith.mulf %182, %184 : vector<2x32xf32>
    %186 = arith.addf %181, %185 : vector<2x32xf32>
    %187 = math.tanh %186 : vector<2x32xf32>
    %188 = vector.extract_strided_slice %165 {offsets = [0, 32], sizes = [2, 32], strides = [1, 1]} : vector<2x64xf32> to vector<2x32xf32>
    %189 = vector.extract_strided_slice %173 {offsets = [0, 32], sizes = [2, 32], strides = [1, 1]} : vector<2x64xf32> to vector<2x32xf32>
    %190 = arith.subf %150, %180 : vector<2x32xf32>
    %191 = arith.mulf %188, %190 : vector<2x32xf32>
    %192 = arith.addf %180, %191 : vector<2x32xf32>
    %193 = arith.subf %153, %187 : vector<2x32xf32>
    %194 = arith.mulf %189, %193 : vector<2x32xf32>
    %195 = arith.addf %187, %194 : vector<2x32xf32>
    %196 = vector.extract_strided_slice %24 {offsets = [8, 0], sizes = [2, 96], strides = [1, 1]} : vector<16x96xf32> to vector<2x96xf32>
    %197 = vector.extract_strided_slice %25 {offsets = [6, 0], sizes = [2, 96], strides = [1, 1]} : vector<16x96xf32> to vector<2x96xf32>
    %cst_33 = arith.constant dense<0.000000e+00> : vector<2x96xf32>
    %198 = tpu.matmul %192, %9, %cst_33 {dimension_numbers = #tpu.dot_dimension_numbers<[1], [0], [0], [1], [0, 0, 1, 1], [], []>} : vector<2x32xf32>, vector<32x96xf32>, vector<2x96xf32> -> vector<2x96xf32>
    %cst_34 = arith.constant dense<0.000000e+00> : vector<2x96xf32>
    %199 = tpu.matmul %195, %10, %cst_34 {dimension_numbers = #tpu.dot_dimension_numbers<[1], [0], [0], [1], [0, 0, 1, 1], [], []>} : vector<2x32xf32>, vector<32x96xf32>, vector<2x96xf32> -> vector<2x96xf32>
    %200 = vector.extract_strided_slice %196 {offsets = [0, 0], sizes = [2, 64], strides = [1, 1]} : vector<2x96xf32> to vector<2x64xf32>
    %201 = vector.extract_strided_slice %198 {offsets = [0, 0], sizes = [2, 64], strides = [1, 1]} : vector<2x96xf32> to vector<2x64xf32>
    %202 = arith.addf %200, %201 : vector<2x64xf32>
    %203 = arith.negf %202 : vector<2x64xf32>
    %204 = math.exp %203 : vector<2x64xf32>
    %cst_35 = arith.constant 1.000000e+00 : f32
    %205 = vector.broadcast %cst_35 : f32 to vector<2x64xf32>
    %206 = arith.addf %205, %204 : vector<2x64xf32>
    %207 = arith.divf %205, %206 : vector<2x64xf32>
    %208 = vector.extract_strided_slice %197 {offsets = [0, 0], sizes = [2, 64], strides = [1, 1]} : vector<2x96xf32> to vector<2x64xf32>
    %209 = vector.extract_strided_slice %199 {offsets = [0, 0], sizes = [2, 64], strides = [1, 1]} : vector<2x96xf32> to vector<2x64xf32>
    %210 = arith.addf %208, %209 : vector<2x64xf32>
    %211 = arith.negf %210 : vector<2x64xf32>
    %212 = math.exp %211 : vector<2x64xf32>
    %cst_36 = arith.constant 1.000000e+00 : f32
    %213 = vector.broadcast %cst_36 : f32 to vector<2x64xf32>
    %214 = arith.addf %213, %212 : vector<2x64xf32>
    %215 = arith.divf %213, %214 : vector<2x64xf32>
    %216 = vector.extract_strided_slice %196 {offsets = [0, 64], sizes = [2, 32], strides = [1, 1]} : vector<2x96xf32> to vector<2x32xf32>
    %217 = vector.extract_strided_slice %207 {offsets = [0, 0], sizes = [2, 32], strides = [1, 1]} : vector<2x64xf32> to vector<2x32xf32>
    %218 = vector.extract_strided_slice %198 {offsets = [0, 64], sizes = [2, 32], strides = [1, 1]} : vector<2x96xf32> to vector<2x32xf32>
    %219 = arith.addf %218, %14 : vector<2x32xf32>
    %220 = arith.mulf %217, %219 : vector<2x32xf32>
    %221 = arith.addf %216, %220 : vector<2x32xf32>
    %222 = math.tanh %221 : vector<2x32xf32>
    %223 = vector.extract_strided_slice %197 {offsets = [0, 64], sizes = [2, 32], strides = [1, 1]} : vector<2x96xf32> to vector<2x32xf32>
    %224 = vector.extract_strided_slice %215 {offsets = [0, 0], sizes = [2, 32], strides = [1, 1]} : vector<2x64xf32> to vector<2x32xf32>
    %225 = vector.extract_strided_slice %199 {offsets = [0, 64], sizes = [2, 32], strides = [1, 1]} : vector<2x96xf32> to vector<2x32xf32>
    %226 = arith.addf %225, %17 : vector<2x32xf32>
    %227 = arith.mulf %224, %226 : vector<2x32xf32>
    %228 = arith.addf %223, %227 : vector<2x32xf32>
    %229 = math.tanh %228 : vector<2x32xf32>
    %230 = vector.extract_strided_slice %207 {offsets = [0, 32], sizes = [2, 32], strides = [1, 1]} : vector<2x64xf32> to vector<2x32xf32>
    %231 = vector.extract_strided_slice %215 {offsets = [0, 32], sizes = [2, 32], strides = [1, 1]} : vector<2x64xf32> to vector<2x32xf32>
    %232 = arith.subf %192, %222 : vector<2x32xf32>
    %233 = arith.mulf %230, %232 : vector<2x32xf32>
    %234 = arith.addf %222, %233 : vector<2x32xf32>
    %235 = arith.subf %195, %229 : vector<2x32xf32>
    %236 = arith.mulf %231, %235 : vector<2x32xf32>
    %237 = arith.addf %229, %236 : vector<2x32xf32>
    %238 = vector.extract_strided_slice %24 {offsets = [10, 0], sizes = [2, 96], strides = [1, 1]} : vector<16x96xf32> to vector<2x96xf32>
    %239 = vector.extract_strided_slice %25 {offsets = [4, 0], sizes = [2, 96], strides = [1, 1]} : vector<16x96xf32> to vector<2x96xf32>
    %cst_37 = arith.constant dense<0.000000e+00> : vector<2x96xf32>
    %240 = tpu.matmul %234, %9, %cst_37 {dimension_numbers = #tpu.dot_dimension_numbers<[1], [0], [0], [1], [0, 0, 1, 1], [], []>} : vector<2x32xf32>, vector<32x96xf32>, vector<2x96xf32> -> vector<2x96xf32>
    %cst_38 = arith.constant dense<0.000000e+00> : vector<2x96xf32>
    %241 = tpu.matmul %237, %10, %cst_38 {dimension_numbers = #tpu.dot_dimension_numbers<[1], [0], [0], [1], [0, 0, 1, 1], [], []>} : vector<2x32xf32>, vector<32x96xf32>, vector<2x96xf32> -> vector<2x96xf32>
    %242 = vector.extract_strided_slice %238 {offsets = [0, 0], sizes = [2, 64], strides = [1, 1]} : vector<2x96xf32> to vector<2x64xf32>
    %243 = vector.extract_strided_slice %240 {offsets = [0, 0], sizes = [2, 64], strides = [1, 1]} : vector<2x96xf32> to vector<2x64xf32>
    %244 = arith.addf %242, %243 : vector<2x64xf32>
    %245 = arith.negf %244 : vector<2x64xf32>
    %246 = math.exp %245 : vector<2x64xf32>
    %cst_39 = arith.constant 1.000000e+00 : f32
    %247 = vector.broadcast %cst_39 : f32 to vector<2x64xf32>
    %248 = arith.addf %247, %246 : vector<2x64xf32>
    %249 = arith.divf %247, %248 : vector<2x64xf32>
    %250 = vector.extract_strided_slice %239 {offsets = [0, 0], sizes = [2, 64], strides = [1, 1]} : vector<2x96xf32> to vector<2x64xf32>
    %251 = vector.extract_strided_slice %241 {offsets = [0, 0], sizes = [2, 64], strides = [1, 1]} : vector<2x96xf32> to vector<2x64xf32>
    %252 = arith.addf %250, %251 : vector<2x64xf32>
    %253 = arith.negf %252 : vector<2x64xf32>
    %254 = math.exp %253 : vector<2x64xf32>
    %cst_40 = arith.constant 1.000000e+00 : f32
    %255 = vector.broadcast %cst_40 : f32 to vector<2x64xf32>
    %256 = arith.addf %255, %254 : vector<2x64xf32>
    %257 = arith.divf %255, %256 : vector<2x64xf32>
    %258 = vector.extract_strided_slice %238 {offsets = [0, 64], sizes = [2, 32], strides = [1, 1]} : vector<2x96xf32> to vector<2x32xf32>
    %259 = vector.extract_strided_slice %249 {offsets = [0, 0], sizes = [2, 32], strides = [1, 1]} : vector<2x64xf32> to vector<2x32xf32>
    %260 = vector.extract_strided_slice %240 {offsets = [0, 64], sizes = [2, 32], strides = [1, 1]} : vector<2x96xf32> to vector<2x32xf32>
    %261 = arith.addf %260, %14 : vector<2x32xf32>
    %262 = arith.mulf %259, %261 : vector<2x32xf32>
    %263 = arith.addf %258, %262 : vector<2x32xf32>
    %264 = math.tanh %263 : vector<2x32xf32>
    %265 = vector.extract_strided_slice %239 {offsets = [0, 64], sizes = [2, 32], strides = [1, 1]} : vector<2x96xf32> to vector<2x32xf32>
    %266 = vector.extract_strided_slice %257 {offsets = [0, 0], sizes = [2, 32], strides = [1, 1]} : vector<2x64xf32> to vector<2x32xf32>
    %267 = vector.extract_strided_slice %241 {offsets = [0, 64], sizes = [2, 32], strides = [1, 1]} : vector<2x96xf32> to vector<2x32xf32>
    %268 = arith.addf %267, %17 : vector<2x32xf32>
    %269 = arith.mulf %266, %268 : vector<2x32xf32>
    %270 = arith.addf %265, %269 : vector<2x32xf32>
    %271 = math.tanh %270 : vector<2x32xf32>
    %272 = vector.extract_strided_slice %249 {offsets = [0, 32], sizes = [2, 32], strides = [1, 1]} : vector<2x64xf32> to vector<2x32xf32>
    %273 = vector.extract_strided_slice %257 {offsets = [0, 32], sizes = [2, 32], strides = [1, 1]} : vector<2x64xf32> to vector<2x32xf32>
    %274 = arith.subf %234, %264 : vector<2x32xf32>
    %275 = arith.mulf %272, %274 : vector<2x32xf32>
    %276 = arith.addf %264, %275 : vector<2x32xf32>
    %277 = arith.subf %237, %271 : vector<2x32xf32>
    %278 = arith.mulf %273, %277 : vector<2x32xf32>
    %279 = arith.addf %271, %278 : vector<2x32xf32>
    %280 = vector.extract_strided_slice %24 {offsets = [12, 0], sizes = [2, 96], strides = [1, 1]} : vector<16x96xf32> to vector<2x96xf32>
    %281 = vector.extract_strided_slice %25 {offsets = [2, 0], sizes = [2, 96], strides = [1, 1]} : vector<16x96xf32> to vector<2x96xf32>
    %cst_41 = arith.constant dense<0.000000e+00> : vector<2x96xf32>
    %282 = tpu.matmul %276, %9, %cst_41 {dimension_numbers = #tpu.dot_dimension_numbers<[1], [0], [0], [1], [0, 0, 1, 1], [], []>} : vector<2x32xf32>, vector<32x96xf32>, vector<2x96xf32> -> vector<2x96xf32>
    %cst_42 = arith.constant dense<0.000000e+00> : vector<2x96xf32>
    %283 = tpu.matmul %279, %10, %cst_42 {dimension_numbers = #tpu.dot_dimension_numbers<[1], [0], [0], [1], [0, 0, 1, 1], [], []>} : vector<2x32xf32>, vector<32x96xf32>, vector<2x96xf32> -> vector<2x96xf32>
    %284 = vector.extract_strided_slice %280 {offsets = [0, 0], sizes = [2, 64], strides = [1, 1]} : vector<2x96xf32> to vector<2x64xf32>
    %285 = vector.extract_strided_slice %282 {offsets = [0, 0], sizes = [2, 64], strides = [1, 1]} : vector<2x96xf32> to vector<2x64xf32>
    %286 = arith.addf %284, %285 : vector<2x64xf32>
    %287 = arith.negf %286 : vector<2x64xf32>
    %288 = math.exp %287 : vector<2x64xf32>
    %cst_43 = arith.constant 1.000000e+00 : f32
    %289 = vector.broadcast %cst_43 : f32 to vector<2x64xf32>
    %290 = arith.addf %289, %288 : vector<2x64xf32>
    %291 = arith.divf %289, %290 : vector<2x64xf32>
    %292 = vector.extract_strided_slice %281 {offsets = [0, 0], sizes = [2, 64], strides = [1, 1]} : vector<2x96xf32> to vector<2x64xf32>
    %293 = vector.extract_strided_slice %283 {offsets = [0, 0], sizes = [2, 64], strides = [1, 1]} : vector<2x96xf32> to vector<2x64xf32>
    %294 = arith.addf %292, %293 : vector<2x64xf32>
    %295 = arith.negf %294 : vector<2x64xf32>
    %296 = math.exp %295 : vector<2x64xf32>
    %cst_44 = arith.constant 1.000000e+00 : f32
    %297 = vector.broadcast %cst_44 : f32 to vector<2x64xf32>
    %298 = arith.addf %297, %296 : vector<2x64xf32>
    %299 = arith.divf %297, %298 : vector<2x64xf32>
    %300 = vector.extract_strided_slice %280 {offsets = [0, 64], sizes = [2, 32], strides = [1, 1]} : vector<2x96xf32> to vector<2x32xf32>
    %301 = vector.extract_strided_slice %291 {offsets = [0, 0], sizes = [2, 32], strides = [1, 1]} : vector<2x64xf32> to vector<2x32xf32>
    %302 = vector.extract_strided_slice %282 {offsets = [0, 64], sizes = [2, 32], strides = [1, 1]} : vector<2x96xf32> to vector<2x32xf32>
    %303 = arith.addf %302, %14 : vector<2x32xf32>
    %304 = arith.mulf %301, %303 : vector<2x32xf32>
    %305 = arith.addf %300, %304 : vector<2x32xf32>
    %306 = math.tanh %305 : vector<2x32xf32>
    %307 = vector.extract_strided_slice %281 {offsets = [0, 64], sizes = [2, 32], strides = [1, 1]} : vector<2x96xf32> to vector<2x32xf32>
    %308 = vector.extract_strided_slice %299 {offsets = [0, 0], sizes = [2, 32], strides = [1, 1]} : vector<2x64xf32> to vector<2x32xf32>
    %309 = vector.extract_strided_slice %283 {offsets = [0, 64], sizes = [2, 32], strides = [1, 1]} : vector<2x96xf32> to vector<2x32xf32>
    %310 = arith.addf %309, %17 : vector<2x32xf32>
    %311 = arith.mulf %308, %310 : vector<2x32xf32>
    %312 = arith.addf %307, %311 : vector<2x32xf32>
    %313 = math.tanh %312 : vector<2x32xf32>
    %314 = vector.extract_strided_slice %291 {offsets = [0, 32], sizes = [2, 32], strides = [1, 1]} : vector<2x64xf32> to vector<2x32xf32>
    %315 = vector.extract_strided_slice %299 {offsets = [0, 32], sizes = [2, 32], strides = [1, 1]} : vector<2x64xf32> to vector<2x32xf32>
    %316 = arith.subf %276, %306 : vector<2x32xf32>
    %317 = arith.mulf %314, %316 : vector<2x32xf32>
    %318 = arith.addf %306, %317 : vector<2x32xf32>
    %319 = arith.subf %279, %313 : vector<2x32xf32>
    %320 = arith.mulf %315, %319 : vector<2x32xf32>
    %321 = arith.addf %313, %320 : vector<2x32xf32>
    %322 = vector.extract_strided_slice %24 {offsets = [14, 0], sizes = [2, 96], strides = [1, 1]} : vector<16x96xf32> to vector<2x96xf32>
    %323 = vector.extract_strided_slice %25 {offsets = [0, 0], sizes = [2, 96], strides = [1, 1]} : vector<16x96xf32> to vector<2x96xf32>
    %cst_45 = arith.constant dense<0.000000e+00> : vector<2x96xf32>
    %324 = tpu.matmul %318, %9, %cst_45 {dimension_numbers = #tpu.dot_dimension_numbers<[1], [0], [0], [1], [0, 0, 1, 1], [], []>} : vector<2x32xf32>, vector<32x96xf32>, vector<2x96xf32> -> vector<2x96xf32>
    %cst_46 = arith.constant dense<0.000000e+00> : vector<2x96xf32>
    %325 = tpu.matmul %321, %10, %cst_46 {dimension_numbers = #tpu.dot_dimension_numbers<[1], [0], [0], [1], [0, 0, 1, 1], [], []>} : vector<2x32xf32>, vector<32x96xf32>, vector<2x96xf32> -> vector<2x96xf32>
    %326 = vector.extract_strided_slice %322 {offsets = [0, 0], sizes = [2, 64], strides = [1, 1]} : vector<2x96xf32> to vector<2x64xf32>
    %327 = vector.extract_strided_slice %324 {offsets = [0, 0], sizes = [2, 64], strides = [1, 1]} : vector<2x96xf32> to vector<2x64xf32>
    %328 = arith.addf %326, %327 : vector<2x64xf32>
    %329 = arith.negf %328 : vector<2x64xf32>
    %330 = math.exp %329 : vector<2x64xf32>
    %cst_47 = arith.constant 1.000000e+00 : f32
    %331 = vector.broadcast %cst_47 : f32 to vector<2x64xf32>
    %332 = arith.addf %331, %330 : vector<2x64xf32>
    %333 = arith.divf %331, %332 : vector<2x64xf32>
    %334 = vector.extract_strided_slice %323 {offsets = [0, 0], sizes = [2, 64], strides = [1, 1]} : vector<2x96xf32> to vector<2x64xf32>
    %335 = vector.extract_strided_slice %325 {offsets = [0, 0], sizes = [2, 64], strides = [1, 1]} : vector<2x96xf32> to vector<2x64xf32>
    %336 = arith.addf %334, %335 : vector<2x64xf32>
    %337 = arith.negf %336 : vector<2x64xf32>
    %338 = math.exp %337 : vector<2x64xf32>
    %cst_48 = arith.constant 1.000000e+00 : f32
    %339 = vector.broadcast %cst_48 : f32 to vector<2x64xf32>
    %340 = arith.addf %339, %338 : vector<2x64xf32>
    %341 = arith.divf %339, %340 : vector<2x64xf32>
    %342 = vector.extract_strided_slice %322 {offsets = [0, 64], sizes = [2, 32], strides = [1, 1]} : vector<2x96xf32> to vector<2x32xf32>
    %343 = vector.extract_strided_slice %333 {offsets = [0, 0], sizes = [2, 32], strides = [1, 1]} : vector<2x64xf32> to vector<2x32xf32>
    %344 = vector.extract_strided_slice %324 {offsets = [0, 64], sizes = [2, 32], strides = [1, 1]} : vector<2x96xf32> to vector<2x32xf32>
    %345 = arith.addf %344, %14 : vector<2x32xf32>
    %346 = arith.mulf %343, %345 : vector<2x32xf32>
    %347 = arith.addf %342, %346 : vector<2x32xf32>
    %348 = math.tanh %347 : vector<2x32xf32>
    %349 = vector.extract_strided_slice %323 {offsets = [0, 64], sizes = [2, 32], strides = [1, 1]} : vector<2x96xf32> to vector<2x32xf32>
    %350 = vector.extract_strided_slice %341 {offsets = [0, 0], sizes = [2, 32], strides = [1, 1]} : vector<2x64xf32> to vector<2x32xf32>
    %351 = vector.extract_strided_slice %325 {offsets = [0, 64], sizes = [2, 32], strides = [1, 1]} : vector<2x96xf32> to vector<2x32xf32>
    %352 = arith.addf %351, %17 : vector<2x32xf32>
    %353 = arith.mulf %350, %352 : vector<2x32xf32>
    %354 = arith.addf %349, %353 : vector<2x32xf32>
    %355 = math.tanh %354 : vector<2x32xf32>
    %356 = vector.extract_strided_slice %333 {offsets = [0, 32], sizes = [2, 32], strides = [1, 1]} : vector<2x64xf32> to vector<2x32xf32>
    %357 = vector.extract_strided_slice %341 {offsets = [0, 32], sizes = [2, 32], strides = [1, 1]} : vector<2x64xf32> to vector<2x32xf32>
    %358 = arith.subf %318, %348 : vector<2x32xf32>
    %359 = arith.mulf %356, %358 : vector<2x32xf32>
    %360 = arith.addf %348, %359 : vector<2x32xf32>
    %361 = arith.subf %321, %355 : vector<2x32xf32>
    %362 = arith.mulf %357, %361 : vector<2x32xf32>
    %363 = arith.addf %355, %362 : vector<2x32xf32>
    %cst_49 = arith.constant dense<0.000000e+00> : vector<2x3xf32>
    %364 = tpu.matmul %360, %18, %cst_49 {dimension_numbers = #tpu.dot_dimension_numbers<[1], [0], [0], [1], [0, 0, 1, 1], [], []>} : vector<2x32xf32>, vector<32x3xf32>, vector<2x3xf32> -> vector<2x3xf32>
    %cst_50 = arith.constant dense<0.000000e+00> : vector<2x3xf32>
    %365 = tpu.matmul %363, %19, %cst_50 {dimension_numbers = #tpu.dot_dimension_numbers<[1], [0], [0], [1], [0, 0, 1, 1], [], []>} : vector<2x32xf32>, vector<32x3xf32>, vector<2x3xf32> -> vector<2x3xf32>
    %366 = arith.addf %364, %365 : vector<2x3xf32>
    %367 = vector.broadcast %20 : vector<1x3xf32> to vector<2x3xf32>
    %368 = arith.addf %366, %367 : vector<2x3xf32>
    %c0_51 = arith.constant 0 : index
    %c0_52 = arith.constant 0 : index
    %369 = vector.load %arg3[%c0_51, %c0_52] : memref<2x3xf32, #tpu.memory_space<vmem>>, vector<2x3xf32>
    tpu.vector_store %arg3[%c0_51, %c0_52], %368 {strides = array<i32>} : memref<2x3xf32, #tpu.memory_space<vmem>>, vector<2x3xf32>,
    return
  }
}

</mosaic_0001>

<llo_original>
// kernel: bert_sentiment_forward.1
$region0: #{bert_sentiment_forward.1}
  #allocation0 [shape = 'u32[]', space=smem, size = 0x4, offset = 0x4, fixed_abs, tag = 'smem constant byte address 0x4 - core index']
  #allocation1 [shape = 'u32[144,128]{1,0:T(1,128)}', space=vmem, size = 0x12000, scoped, tag = 'internal scratch']
  %s0 = inlined_call_operand.vmem [shape: s32[16,1], index: 0, kind: input, shape index: {}]
  %s1 = inlined_call_operand.vmem [shape: f32[100,32], index: 1, kind: input, shape index: {}]
  %s2 = inlined_call_operand.hbm [shape: f32[144,192], index: 2, kind: input, shape index: {}]
  %s3 = inlined_call_operand.hbm [shape: f32[2,3], index: 3, kind: output, shape index: {}]
  %s4 = sld [smem:[#allocation0]]
  $region26: #{bert_sentiment_forward.1} parent=0
    _
  %s6 = ssub.s32 1, %s4
  %s7 = scalar_select 0, %s6, %s4
  $region1: #{bert_sentiment_forward.1} parent=0
    #allocation2 [shape = 'u8[147456]{0}', space=vmem, size = 0x24000, scoped, tag = 'input window, operand 2, single buffered']
    #allocation3 [shape = 's32[1]{0}', space=sflag, size = 0x4, scoped, tag = 'scoped memory for bert_sentiment_forward.1']
    #allocation4 [shape = 's32[1]{0}', space=sflag, size = 0x4, scoped, tag = 'scoped memory for bert_sentiment_forward.1']
    #allocation5 [shape = 'u8[1024]{0}', space=vmem, size = 0x400, scoped, tag = 'output window, operand 0, single buffered']
    %8 = vsyncpa [#allocation3], 0
    %9 = vsyncpa [#allocation4], 0
    // Predicated region
    $region2: #{bert_sentiment_forward.1} parent=1 // pred_check
      _
    $region3: #{bert_sentiment_forward.1} parent=1 // pred_check_branch
      %11 = sbr.rel (0) target = $region5
    $region4: #{bert_sentiment_forward.1} parent=1 // pred_region
      _
    $region5: #{bert_sentiment_forward.1} parent=1 // pred_fallthru
      _
    // Predicated region
    $region6: #{bert_sentiment_forward.1} parent=1 // pred_check
      _
    $region7: #{bert_sentiment_forward.1} parent=1 // pred_check_branch
      %13 = sbr.rel (0) target = $region9
    $region8: #{bert_sentiment_forward.1} parent=1 // pred_region
      _
    $region9: #{bert_sentiment_forward.1} parent=1 // pred_fallthru
      _
    // Predicated region
    $region10: #{bert_sentiment_forward.1} parent=1 // pred_check
      _
    $region11: #{bert_sentiment_forward.1} parent=1 // pred_check_branch
      %15 = sbr.rel (0) target = $region13
    $region12: #{bert_sentiment_forward.1} parent=1 // pred_region
      %s17 = ssub.s32 4608, 4608
      %18 = vsyncadd [#allocation3], %s17
      %s19 = sshll.u32 [#allocation2], 4
      %s20 = int_to_ptr.vmem [resolvable:$true] %s19
      %25 = dma.hbm_to_vmem [thread:$0]  %s2, 4608, %s20, [#allocation3], 256, 256, 16
    $region13: #{bert_sentiment_forward.1} parent=1 // pred_fallthru
      _
    // Predicated region
    $region14: #{bert_sentiment_forward.1} parent=1 // pred_check
      _
    $region15: #{bert_sentiment_forward.1} parent=1 // pred_check_branch
      %27 = sbr.rel (0) target = $region17
    $region16: #{bert_sentiment_forward.1} parent=1 // pred_region
      %28 = dma.done [#allocation3], 4608
    $region17: #{bert_sentiment_forward.1} parent=1 // pred_fallthru
      _
    %v29 = vld [vmem:[%s0] sm:$0xff]
    %v30 = vld [vmem:[%s0 + $0x8] sm:$0xff]
    %v31 = vlaneseq
    %v32 = vand.u32 %v31, 127
    %33 = vset.pattern.permute.xlu0 0
    %34 = vperm.xlu0 %33, %v29
    %v35 = vpop.permute.xlu0 %34
    %36 = vset.pattern.permute.xlu0 0
    %37 = vperm.xlu0 %36, %v30
    %v38 = vpop.permute.xlu0 %37
    %vm39 = vcmp.eq.s32.totalorder %v32, %v35
    %vm40 = vcmp.eq.s32.totalorder %v32, %v38
    %v41 = vsel %vm39, 1, 0
    %v42 = vsel %vm40, 1, 0
    %v43 = vcvt.s32.f32 %v41
    %v44 = vcvt.s32.f32 %v42
    %v45 = vld [vmem:[%s1] sm:$0xff]
    %v46 = vld [vmem:[%s1 + $0x8] sm:$0xff]
    %v47 = vld [vmem:[%s1 + $0x10] sm:$0xff]
    %v48 = vld [vmem:[%s1 + $0x18] sm:$0xff]
    %v49 = vld [vmem:[%s1 + $0x20] sm:$0xff]
    %v50 = vld [vmem:[%s1 + $0x28] sm:$0xff]
    %v51 = vld [vmem:[%s1 + $0x30] sm:$0xff]
    %v52 = vld [vmem:[%s1 + $0x38] sm:$0xff]
    %v53 = vld [vmem:[%s1 + $0x40] sm:$0xff]
    %v54 = vld [vmem:[%s1 + $0x48] sm:$0xff]
    %v55 = vld [vmem:[%s1 + $0x50] sm:$0xff]
    %v56 = vld [vmem:[%s1 + $0x58] sm:$0xff]
    %v57 = vld [vmem:[%s1 + $0x60] sm:$0xf]
    %vm58 = vcmask 818176
    %v60 = vsel %vm58, %v43, 0
    %v63 = vsel %vm58, %v44, 0
    %vm65 = vcmask 1043456
    %v67 = vsel %vm65, %v57, 0
    %69 = vmatprep.subr.mxu0 0.0
    %70 = vmatpush1.msra.mxu0 %v45
    %71 = vmatprep.subr.mxu0 0.0
    %72 = vmatpush1.msra.mxu0 %v46
    %73 = vmatprep.subr.mxu0 0.0
    %74 = vmatpush1.msra.mxu0 %v47
    %75 = vmatprep.subr.mxu0 0.0
    %76 = vmatpush1.msra.mxu0 %v48
    %77 = vmatprep.subr.mxu0 0.0
    %78 = vmatpush1.msra.mxu0 %v49
    %79 = vmatprep.subr.mxu0 0.0
    %80 = vmatpush1.msra.mxu0 %v50
    %81 = vmatprep.subr.mxu0 0.0
    %82 = vmatpush1.msra.mxu0 %v51
    %83 = vmatprep.subr.mxu0 0.0
    %84 = vmatpush1.msra.mxu0 %v52
    %85 = vmatprep.subr.mxu0 0.0
    %86 = vmatpush1.msra.mxu0 %v53
    %87 = vmatprep.subr.mxu0 0.0
    %88 = vmatpush1.msra.mxu0 %v54
    %89 = vmatprep.subr.mxu0 0.0
    %90 = vmatpush1.msra.mxu0 %v55
    %91 = vmatprep.subr.mxu0 0.0
    %92 = vmatpush1.msra.mxu0 %v56
    %93 = vmatprep.subr.mxu0 0.0
    %94 = vmatpush1.msra.mxu0 %v67
    %95 = vmatprep.subr.mxu0 0.0
    %96 = vmatpush1.msra.mxu0 0.0
    %97 = vmatprep.subr.mxu0 0.0
    %98 = vmatpush1.msra.mxu0 0.0
    %99 = vmatprep.subr.mxu0 0.0
    %100 = vmatpush1.msra.mxu0 0.0
    %101 = vmatprep.subr.mxu0 0.0
    %102 = vmatpush1.msra.mxu0 0.0
    %103 = vmatprep.subr.mxu0 0.0
    %104 = vmatpush1.msra.mxu0 0.0
    %105 = vmatprep.subr.mxu0 0.0
    %106 = vmatpush1.msra.mxu0 0.0
    %107 = vmatprep.subr.mxu0 0.0
    %108 = vmatpush1.msra.mxu0 0.0
    %109 = vmatprep.subr.mxu0 0.0
    %110 = vmatpush1.msra.mxu0 0.0
    %111 = vmatprep.subr.mxu0 0.0
    %112 = vmatpush1.msra.mxu0 0.0
    %113 = vmatprep.subr.mxu0 0.0
    %114 = vmatpush1.msra.mxu0 0.0
    %115 = vmatprep.subr.mxu0 0.0
    %116 = vmatpush1.msra.mxu0 0.0
    %117 = vmatprep.subr.mxu0 0.0
    %118 = vmatpush1.msra.mxu0 0.0
    %119 = vmatprep.subr.mxu0 0.0
    %120 = vmatpush1.msra.mxu0 0.0
    %121 = vmatprep.subr.mxu0 0.0
    %122 = vmatpush1.msra.mxu0 0.0
    %123 = vmatprep.subr.mxu0 0.0
    %124 = vmatpush1.msra.mxu0 0.0
    %125 = vmatprep.subr.mxu0 0.0
    %126 = vmatpush1.msra.mxu0 0.0
    %127 = vmatprep.subr.mxu0 0.0
    %128 = vmatpush1.msra.mxu0 0.0
    %129 = vmatprep.subr.mxu0 0.0
    %130 = vmatpush1.msra.mxu0 0.0
    %131 = vmatprep.subr.mxu0 0.0
    %132 = vmatpush1.msra.mxu0 0.0
    %133 = vmatprep.mubr.f32.mxu0 0.0
    %134 = vmatmul.mubr.f32.gmra.mrb[0].mxu0 %v60
    %v135 = vpop.f32.mrb[0].mxu0
    %v136 = vadd.f32 0.0, %v135
    %v137 = vpop.f32.mrb[0].mxu0
    %138 = vmatprep.mubr.f32.mxu0 0.0
    %139 = vmatmul.mubr.f32.gmra.mrb[0].mxu0 %v63
    %v140 = vpop.f32.mrb[0].mxu0
    %v141 = vadd.f32 0.0, %v140
    %v142 = vpop.f32.mrb[0].mxu0
    %143 = vdwg.mxu0
    %v144 = vld [vmem:[#allocation2] sm:$0xff]
    %v145 = vld [vmem:[#allocation2 + $0x8] sm:$0xff]
    %v146 = vld [vmem:[#allocation2 + $0x10] sm:$0xff]
    %v147 = vld [vmem:[#allocation2 + $0x18] sm:$0xff]
    %v148 = vld [vmem:[#allocation2 + $0x20] sm:$0xff]
    %v149 = vld [vmem:[#allocation2 + $0x28] sm:$0xff]
    %v150 = vld [vmem:[#allocation2 + $0x30] sm:$0xff]
    %v151 = vld [vmem:[#allocation2 + $0x38] sm:$0xff]
    %v152 = vld [vmem:[#allocation2 + $0x40] sm:$0xff]
    %v153 = vld [vmem:[#allocation2 + $0x50] sm:$0xff]
    %v154 = vld [vmem:[#allocation2 + $0x60] sm:$0xff]
    %v155 = vld [vmem:[#allocation2 + $0x70] sm:$0xff]
    %v156 = vld [vmem:[#allocation2 + $0x48] sm:$0xff]
    %v157 = vld [vmem:[#allocation2 + $0x58] sm:$0xff]
    %v158 = vld [vmem:[#allocation2 + $0x68] sm:$0xff]
    %v159 = vld [vmem:[#allocation2 + $0x78] sm:$0xff]
    %s160 = scalar_lea.vmem [#allocation2], 128
    %v161 = vld [vmem:[%s160] ss:$8 sm:$0x3]
    %v162 = vld [vmem:[#allocation2 + $0x81] ss:$0 sm:$0xff]
    %v163 = vld [vmem:[#allocation2 + $0x90] sm:$0xff]
    %v164 = vld [vmem:[#allocation2 + $0xa0] sm:$0xff]
    %v165 = vld [vmem:[#allocation2 + $0xb0] sm:$0xff]
    %v166 = vld [vmem:[#allocation2 + $0xc0] sm:$0xff]
    %v167 = vld [vmem:[#allocation2 + $0xd0] sm:$0xff]
    %v168 = vld [vmem:[#allocation2 + $0xe0] sm:$0xff]
    %v169 = vld [vmem:[#allocation2 + $0xf0] sm:$0xff]
    %v170 = vld [vmem:[#allocation2 + $0x100] sm:$0xff]
    %v171 = vld [vmem:[#allocation2 + $0x110] ss:$0 sm:$0xff]
    %v173 = vlaneseq
    %v174 = vshrl.u32 %v173, 7
    %v175 = vsub.s32 0, %v174
    %v176 = vrot.slane %v161, %v175
    %v177 = vlaneseq
    %v178 = vshrl.u32 %v177, 7
    %v179 = vsub.s32 1, %v178
    %v180 = vrot.slane %v161, %v179
    %vm183 = vcmask 261120
    %v185 = vsel %vm183, %v136, 0
    %v188 = vsel %vm183, %v141, 0
    %190 = vmatprep.subr.mxu0 %v145
    %191 = vmatpush1.msra.mxu0 %v144
    %192 = vmatprep.subr.mxu0 %v147
    %193 = vmatpush1.msra.mxu0 %v146
    %194 = vmatprep.subr.mxu0 %v149
    %195 = vmatpush1.msra.mxu0 %v148
    %196 = vmatprep.subr.mxu0 %v151
    %197 = vmatpush1.msra.mxu0 %v150
    %198 = vmatprep.subr.mxu0 0.0
    %199 = vmatpush1.msra.mxu0 0.0
    %200 = vmatprep.subr.mxu0 0.0
    %201 = vmatpush1.msra.mxu0 0.0
    %202 = vmatprep.subr.mxu0 0.0
    %203 = vmatpush1.msra.mxu0 0.0
    %204 = vmatprep.subr.mxu0 0.0
    %205 = vmatpush1.msra.mxu0 0.0
    %206 = vmatprep.subr.mxu0 0.0
    %207 = vmatpush1.msra.mxu0 0.0
    %208 = vmatprep.subr.mxu0 0.0
    %209 = vmatpush1.msra.mxu0 0.0
    %210 = vmatprep.subr.mxu0 0.0
    %211 = vmatpush1.msra.mxu0 0.0
    %212 = vmatprep.subr.mxu0 0.0
    %213 = vmatpush1.msra.mxu0 0.0
    %214 = vmatprep.subr.mxu0 0.0
    %215 = vmatpush1.msra.mxu0 0.0
    %216 = vmatprep.subr.mxu0 0.0
    %217 = vmatpush1.msra.mxu0 0.0
    %218 = vmatprep.subr.mxu0 0.0
    %219 = vmatpush1.msra.mxu0 0.0
    %220 = vmatprep.subr.mxu0 0.0
    %221 = vmatpush1.msra.mxu0 0.0
    %222 = vmatprep.subr.mxu0 0.0
    %223 = vmatpush1.msra.mxu0 0.0
    %224 = vmatprep.subr.mxu0 0.0
    %225 = vmatpush1.msra.mxu0 0.0
    %226 = vmatprep.subr.mxu0 0.0
    %227 = vmatpush1.msra.mxu0 0.0
    %228 = vmatprep.subr.mxu0 0.0
    %229 = vmatpush1.msra.mxu0 0.0
    %230 = vmatprep.subr.mxu0 0.0
    %231 = vmatpush1.msra.mxu0 0.0
    %232 = vmatprep.subr.mxu0 0.0
    %233 = vmatpush1.msra.mxu0 0.0
    %234 = vmatprep.subr.mxu0 0.0
    %235 = vmatpush1.msra.mxu0 0.0
    %236 = vmatprep.subr.mxu0 0.0
    %237 = vmatpush1.msra.mxu0 0.0
    %238 = vmatprep.subr.mxu0 0.0
    %239 = vmatpush1.msra.mxu0 0.0
    %240 = vmatprep.subr.mxu0 0.0
    %241 = vmatpush1.msra.mxu0 0.0
    %242 = vmatprep.subr.mxu0 0.0
    %243 = vmatpush1.msra.mxu0 0.0
    %244 = vmatprep.subr.mxu0 0.0
    %245 = vmatpush1.msra.mxu0 0.0
    %246 = vmatprep.subr.mxu0 0.0
    %247 = vmatpush1.msra.mxu0 0.0
    %248 = vmatprep.subr.mxu0 0.0
    %249 = vmatpush1.msra.mxu0 0.0
    %250 = vmatprep.subr.mxu0 0.0
    %251 = vmatpush1.msra.mxu0 0.0
    %252 = vmatprep.subr.mxu0 0.0
    %253 = vmatpush1.msra.mxu0 0.0
    %254 = vmatprep.mubr.f32.mxu0 0.0
    %255 = vmatmul.mubr.f32.gmra.mrb[0].mxu0 %v185
    %v256 = vpop.f32.mrb[0].mxu0
    %v257 = vadd.f32 %v176, %v256
    %v258 = vpop.f32.mrb[0].mxu0
    %v259 = vadd.f32 %v180, %v258
    %260 = vmatprep.mubr.f32.mxu0 0.0
    %261 = vmatmul.mubr.f32.gmra.mrb[0].mxu0 %v188
    %v262 = vpop.f32.mrb[0].mxu0
    %v263 = vadd.f32 %v176, %v262
    %v264 = vpop.f32.mrb[0].mxu0
    %v265 = vadd.f32 %v180, %v264
    %266 = vdwg.mxu0
    %v268 = vsel %vm183, 0.0, 0
    %270 = vmatprep.subr.mxu0 0.0
    %271 = vmatpush1.msra.mxu0 %v152
    %272 = vmatprep.subr.mxu0 0.0
    %273 = vmatpush1.msra.mxu0 %v153
    %274 = vmatprep.subr.mxu0 0.0
    %275 = vmatpush1.msra.mxu0 %v154
    %276 = vmatprep.subr.mxu0 0.0
    %277 = vmatpush1.msra.mxu0 %v155
    %278 = vmatprep.subr.mxu0 0.0
    %279 = vmatpush1.msra.mxu0 0.0
    %280 = vmatprep.subr.mxu0 0.0
    %281 = vmatpush1.msra.mxu0 0.0
    %282 = vmatprep.subr.mxu0 0.0
    %283 = vmatpush1.msra.mxu0 0.0
    %284 = vmatprep.subr.mxu0 0.0
    %285 = vmatpush1.msra.mxu0 0.0
    %286 = vmatprep.subr.mxu0 0.0
    %287 = vmatpush1.msra.mxu0 0.0
    %288 = vmatprep.subr.mxu0 0.0
    %289 = vmatpush1.msra.mxu0 0.0
    %290 = vmatprep.subr.mxu0 0.0
    %291 = vmatpush1.msra.mxu0 0.0
    %292 = vmatprep.subr.mxu0 0.0
    %293 = vmatpush1.msra.mxu0 0.0
    %294 = vmatprep.subr.mxu0 0.0
    %295 = vmatpush1.msra.mxu0 0.0
    %296 = vmatprep.subr.mxu0 0.0
    %297 = vmatpush1.msra.mxu0 0.0
    %298 = vmatprep.subr.mxu0 0.0
    %299 = vmatpush1.msra.mxu0 0.0
    %300 = vmatprep.subr.mxu0 0.0
    %301 = vmatpush1.msra.mxu0 0.0
    %302 = vmatprep.subr.mxu0 0.0
    %303 = vmatpush1.msra.mxu0 0.0
    %304 = vmatprep.subr.mxu0 0.0
    %305 = vmatpush1.msra.mxu0 0.0
    %306 = vmatprep.subr.mxu0 0.0
    %307 = vmatpush1.msra.mxu0 0.0
    %308 = vmatprep.subr.mxu0 0.0
    %309 = vmatpush1.msra.mxu0 0.0
    %310 = vmatprep.subr.mxu0 0.0
    %311 = vmatpush1.msra.mxu0 0.0
    %312 = vmatprep.subr.mxu0 0.0
    %313 = vmatpush1.msra.mxu0 0.0
    %314 = vmatprep.subr.mxu0 0.0
    %315 = vmatpush1.msra.mxu0 0.0
    %316 = vmatprep.subr.mxu0 0.0
    %317 = vmatpush1.msra.mxu0 0.0
    %318 = vmatprep.subr.mxu0 0.0
    %319 = vmatpush1.msra.mxu0 0.0
    %320 = vmatprep.subr.mxu0 0.0
    %321 = vmatpush1.msra.mxu0 0.0
    %322 = vmatprep.subr.mxu0 0.0
    %323 = vmatpush1.msra.mxu0 0.0
    %324 = vmatprep.subr.mxu0 0.0
    %325 = vmatpush1.msra.mxu0 0.0
    %326 = vmatprep.subr.mxu0 0.0
    %327 = vmatpush1.msra.mxu0 0.0
    %328 = vmatprep.subr.mxu0 0.0
    %329 = vmatpush1.msra.mxu0 0.0
    %330 = vmatprep.subr.mxu0 0.0
    %331 = vmatpush1.msra.mxu0 0.0
    %332 = vmatprep.subr.mxu0 0.0
    %333 = vmatpush1.msra.mxu0 0.0
    %334 = vmatprep.mubr.f32.mxu0 0.0
    %335 = vmatmul.mubr.f32.gmra.mrb[0].mxu0 %v268
    %v336 = vpop.f32.mrb[0].mxu0
    %v337 = vadd.f32 0.0, %v336
    %v338 = vpop.f32.mrb[0].mxu0
    %339 = vdwg.mxu0
    %348 = vrot.lane.b32.xlu0 %v152, 32
    %v349 = vpop.permute.xlu0 %348
    %350 = vrot.lane.b32.xlu0 %v156, 32
    %v351 = vpop.permute.xlu0 %350
    %352 = vrot.lane.b32.xlu0 %v153, 32
    %v353 = vpop.permute.xlu0 %352
    %354 = vrot.lane.b32.xlu0 %v157, 32
    %v355 = vpop.permute.xlu0 %354
    %356 = vrot.lane.b32.xlu0 %v154, 32
    %v357 = vpop.permute.xlu0 %356
    %358 = vrot.lane.b32.xlu0 %v158, 32
    %v359 = vpop.permute.xlu0 %358
    %360 = vrot.lane.b32.xlu0 %v155, 32
    %v361 = vpop.permute.xlu0 %360
    %362 = vrot.lane.b32.xlu0 %v159, 32
    %v363 = vpop.permute.xlu0 %362
    %v364 = vsel %vm183, %v349, %v351
    %v365 = vsel %vm183, %v353, %v355
    %v366 = vsel %vm183, %v357, %v359
    %v367 = vsel %vm183, %v361, %v363
    %372 = vmatprep.subr.mxu0 0.0
    %373 = vmatpush1.msra.mxu0 %v364
    %374 = vmatprep.subr.mxu0 0.0
    %375 = vmatpush1.msra.mxu0 %v365
    %376 = vmatprep.subr.mxu0 0.0
    %377 = vmatpush1.msra.mxu0 %v366
    %378 = vmatprep.subr.mxu0 0.0
    %379 = vmatpush1.msra.mxu0 %v367
    %380 = vmatprep.subr.mxu0 0.0
    %381 = vmatpush1.msra.mxu0 0.0
    %382 = vmatprep.subr.mxu0 0.0
    %383 = vmatpush1.msra.mxu0 0.0
    %384 = vmatprep.subr.mxu0 0.0
    %385 = vmatpush1.msra.mxu0 0.0
    %386 = vmatprep.subr.mxu0 0.0
    %387 = vmatpush1.msra.mxu0 0.0
    %388 = vmatprep.subr.mxu0 0.0
    %389 = vmatpush1.msra.mxu0 0.0
    %390 = vmatprep.subr.mxu0 0.0
    %391 = vmatpush1.msra.mxu0 0.0
    %392 = vmatprep.subr.mxu0 0.0
    %393 = vmatpush1.msra.mxu0 0.0
    %394 = vmatprep.subr.mxu0 0.0
    %395 = vmatpush1.msra.mxu0 0.0
    %396 = vmatprep.subr.mxu0 0.0
    %397 = vmatpush1.msra.mxu0 0.0
    %398 = vmatprep.subr.mxu0 0.0
    %399 = vmatpush1.msra.mxu0 0.0
    %400 = vmatprep.subr.mxu0 0.0
    %401 = vmatpush1.msra.mxu0 0.0
    %402 = vmatprep.subr.mxu0 0.0
    %403 = vmatpush1.msra.mxu0 0.0
    %404 = vmatprep.subr.mxu0 0.0
    %405 = vmatpush1.msra.mxu0 0.0
    %406 = vmatprep.subr.mxu0 0.0
    %407 = vmatpush1.msra.mxu0 0.0
    %408 = vmatprep.subr.mxu0 0.0
    %409 = vmatpush1.msra.mxu0 0.0
    %410 = vmatprep.subr.mxu0 0.0
    %411 = vmatpush1.msra.mxu0 0.0
    %412 = vmatprep.subr.mxu0 0.0
    %413 = vmatpush1.msra.mxu0 0.0
    %414 = vmatprep.subr.mxu0 0.0
    %415 = vmatpush1.msra.mxu0 0.0
    %416 = vmatprep.subr.mxu0 0.0
    %417 = vmatpush1.msra.mxu0 0.0
    %418 = vmatprep.subr.mxu0 0.0
    %419 = vmatpush1.msra.mxu0 0.0
    %420 = vmatprep.subr.mxu0 0.0
    %421 = vmatpush1.msra.mxu0 0.0
    %422 = vmatprep.subr.mxu0 0.0
    %423 = vmatpush1.msra.mxu0 0.0
    %424 = vmatprep.subr.mxu0 0.0
    %425 = vmatpush1.msra.mxu0 0.0
    %426 = vmatprep.subr.mxu0 0.0
    %427 = vmatpush1.msra.mxu0 0.0
    %428 = vmatprep.subr.mxu0 0.0
    %429 = vmatpush1.msra.mxu0 0.0
    %430 = vmatprep.subr.mxu0 0.0
    %431 = vmatpush1.msra.mxu0 0.0
    %432 = vmatprep.subr.mxu0 0.0
    %433 = vmatpush1.msra.mxu0 0.0
    %434 = vmatprep.subr.mxu0 0.0
    %435 = vmatpush1.msra.mxu0 0.0
    %436 = vmatprep.mubr.f32.mxu0 0.0
    %437 = vmatmul.mubr.f32.gmra.mrb[0].mxu0 %v268
    %v438 = vpop.f32.mrb[0].mxu0
    %v439 = vadd.f32 0.0, %v438
    %v440 = vpop.f32.mrb[0].mxu0
    %441 = vdwg.mxu0
    %v442 = vadd.f32 %v257, %v337
    %v443 = vxor.u32 %v442, 2147483648
    %v444 = vmul.f32 %v443, 1.442695
    %v445 = vpow.pop %v444
    %v446 = vadd.f32 %v445, 1.0
    %v447 = vrcp.pop %v446
    %v448 = vmul.f32 1.0, %v447
    %v450 = vrot.slane %v439, 2
    %451 = vrot.lane.b32.xlu0 %v450, 96
    %v452 = vpop.permute.xlu0 %451
    %v454 = vadd.f32 %v263, %v452
    %v455 = vadd.f32 %v265, %v452
    %v456 = vxor.u32 %v454, 2147483648
    %v457 = vxor.u32 %v455, 2147483648
    %v458 = vmul.f32 %v456, 1.442695
    %v459 = vpow.pop %v458
    %v460 = vmul.f32 %v457, 1.442695
    %v461 = vpow.pop %v460
    %v462 = vadd.f32 %v459, 1.0
    %v463 = vadd.f32 %v461, 1.0
    %v464 = vrcp.pop %v462
    %v465 = vmul.f32 1.0, %v464
    %v466 = vrcp.pop %v463
    %v467 = vmul.f32 1.0, %v466
    %469 = vrot.lane.b32.xlu0 %v162, 64
    %v470 = vpop.permute.xlu0 %469
    %v472 = vadd.f32 %v337, %v470
    %474 = vrot.lane.b32.xlu0 %v472, 64
    %v475 = vpop.permute.xlu0 %474
    %v477 = vmul.f32 %v448, %v475
    %479 = vrot.lane.b32.xlu0 %v477, 64
    %v480 = vpop.permute.xlu0 %479
    %v482 = vadd.f32 %v257, %v480
    %v483 = vtanh.pop %v482
    %484 = vrot.lane.b32.xlu0 %v162, 32
    %v485 = vpop.permute.xlu0 %484
    %v487 = vadd.f32 %v439, %v485
    %v489 = vrot.slane %v487, 2
    %490 = vrot.lane.b32.xlu0 %v489, 32
    %v491 = vpop.permute.xlu0 %490
    %v493 = vmul.f32 %v465, %v491
    %495 = vrot.lane.b32.xlu0 %v493, 64
    %v496 = vpop.permute.xlu0 %495
    %v498 = vadd.f32 %v265, %v496
    %v499 = vtanh.pop %v498
    %v500 = vsub.f32 0.0, %v483
    %502 = vrot.lane.b32.xlu0 %v500, 96
    %v503 = vpop.permute.xlu0 %502
    %v505 = vmul.f32 %v448, %v503
    %507 = vrot.lane.b32.xlu0 %v505, 32
    %v508 = vpop.permute.xlu0 %507
    %v510 = vadd.f32 %v483, %v508
    %v511 = vsub.f32 0.0, %v499
    %513 = vrot.lane.b32.xlu0 %v511, 96
    %v514 = vpop.permute.xlu0 %513
    %v516 = vmul.f32 %v467, %v514
    %518 = vrot.lane.b32.xlu0 %v516, 32
    %v519 = vpop.permute.xlu0 %518
    %v521 = vadd.f32 %v499, %v519
    %523 = vrot.lane.b32.xlu0 %v510, 64
    %v524 = vpop.permute.xlu0 %523
    %v525 = vsel %vm183, %v524, 0
    %527 = vmatprep.subr.mxu0 0.0
    %528 = vmatpush1.msra.mxu0 %v152
    %529 = vmatprep.subr.mxu0 0.0
    %530 = vmatpush1.msra.mxu0 %v153
    %531 = vmatprep.subr.mxu0 0.0
    %532 = vmatpush1.msra.mxu0 %v154
    %533 = vmatprep.subr.mxu0 0.0
    %534 = vmatpush1.msra.mxu0 %v155
    %535 = vmatprep.subr.mxu0 0.0
    %536 = vmatpush1.msra.mxu0 0.0
    %537 = vmatprep.subr.mxu0 0.0
    %538 = vmatpush1.msra.mxu0 0.0
    %539 = vmatprep.subr.mxu0 0.0
    %540 = vmatpush1.msra.mxu0 0.0
    %541 = vmatprep.subr.mxu0 0.0
    %542 = vmatpush1.msra.mxu0 0.0
    %543 = vmatprep.subr.mxu0 0.0
    %544 = vmatpush1.msra.mxu0 0.0
    %545 = vmatprep.subr.mxu0 0.0
    %546 = vmatpush1.msra.mxu0 0.0
    %547 = vmatprep.subr.mxu0 0.0
    %548 = vmatpush1.msra.mxu0 0.0
    %549 = vmatprep.subr.mxu0 0.0
    %550 = vmatpush1.msra.mxu0 0.0
    %551 = vmatprep.subr.mxu0 0.0
    %552 = vmatpush1.msra.mxu0 0.0
    %553 = vmatprep.subr.mxu0 0.0
    %554 = vmatpush1.msra.mxu0 0.0
    %555 = vmatprep.subr.mxu0 0.0
    %556 = vmatpush1.msra.mxu0 0.0
    %557 = vmatprep.subr.mxu0 0.0
    %558 = vmatpush1.msra.mxu0 0.0
    %559 = vmatprep.subr.mxu0 0.0
    %560 = vmatpush1.msra.mxu0 0.0
    %561 = vmatprep.subr.mxu0 0.0
    %562 = vmatpush1.msra.mxu0 0.0
    %563 = vmatprep.subr.mxu0 0.0
    %564 = vmatpush1.msra.mxu0 0.0
    %565 = vmatprep.subr.mxu0 0.0
    %566 = vmatpush1.msra.mxu0 0.0
    %567 = vmatprep.subr.mxu0 0.0
    %568 = vmatpush1.msra.mxu0 0.0
    %569 = vmatprep.subr.mxu0 0.0
    %570 = vmatpush1.msra.mxu0 0.0
    %571 = vmatprep.subr.mxu0 0.0
    %572 = vmatpush1.msra.mxu0 0.0
    %573 = vmatprep.subr.mxu0 0.0
    %574 = vmatpush1.msra.mxu0 0.0
    %575 = vmatprep.subr.mxu0 0.0
    %576 = vmatpush1.msra.mxu0 0.0
    %577 = vmatprep.subr.mxu0 0.0
    %578 = vmatpush1.msra.mxu0 0.0
    %579 = vmatprep.subr.mxu0 0.0
    %580 = vmatpush1.msra.mxu0 0.0
    %581 = vmatprep.subr.mxu0 0.0
    %582 = vmatpush1.msra.mxu0 0.0
    %583 = vmatprep.subr.mxu0 0.0
    %584 = vmatpush1.msra.mxu0 0.0
    %585 = vmatprep.subr.mxu0 0.0
    %586 = vmatpush1.msra.mxu0 0.0
    %587 = vmatprep.subr.mxu0 0.0
    %588 = vmatpush1.msra.mxu0 0.0
    %589 = vmatprep.subr.mxu0 0.0
    %590 = vmatpush1.msra.mxu0 0.0
    %591 = vmatprep.mubr.f32.mxu0 0.0
    %592 = vmatmul.mubr.f32.gmra.mrb[0].mxu0 %v525
    %v593 = vpop.f32.mrb[0].mxu0
    %v594 = vadd.f32 0.0, %v593
    %v595 = vpop.f32.mrb[0].mxu0
    %596 = vdwg.mxu0
    %v598 = vrot.slane %v521, 6
    %599 = vrot.lane.b32.xlu0 %v598, 96
    %v600 = vpop.permute.xlu0 %599
    %v601 = vsel %vm183, %v600, 0
    %603 = vmatprep.subr.mxu0 0.0
    %604 = vmatpush1.msra.mxu0 %v364
    %605 = vmatprep.subr.mxu0 0.0
    %606 = vmatpush1.msra.mxu0 %v365
    %607 = vmatprep.subr.mxu0 0.0
    %608 = vmatpush1.msra.mxu0 %v366
    %609 = vmatprep.subr.mxu0 0.0
    %610 = vmatpush1.msra.mxu0 %v367
    %611 = vmatprep.subr.mxu0 0.0
    %612 = vmatpush1.msra.mxu0 0.0
    %613 = vmatprep.subr.mxu0 0.0
    %614 = vmatpush1.msra.mxu0 0.0
    %615 = vmatprep.subr.mxu0 0.0
    %616 = vmatpush1.msra.mxu0 0.0
    %617 = vmatprep.subr.mxu0 0.0
    %618 = vmatpush1.msra.mxu0 0.0
    %619 = vmatprep.subr.mxu0 0.0
    %620 = vmatpush1.msra.mxu0 0.0
    %621 = vmatprep.subr.mxu0 0.0
    %622 = vmatpush1.msra.mxu0 0.0
    %623 = vmatprep.subr.mxu0 0.0
    %624 = vmatpush1.msra.mxu0 0.0
    %625 = vmatprep.subr.mxu0 0.0
    %626 = vmatpush1.msra.mxu0 0.0
    %627 = vmatprep.subr.mxu0 0.0
    %628 = vmatpush1.msra.mxu0 0.0
    %629 = vmatprep.subr.mxu0 0.0
    %630 = vmatpush1.msra.mxu0 0.0
    %631 = vmatprep.subr.mxu0 0.0
    %632 = vmatpush1.msra.mxu0 0.0
    %633 = vmatprep.subr.mxu0 0.0
    %634 = vmatpush1.msra.mxu0 0.0
    %635 = vmatprep.subr.mxu0 0.0
    %636 = vmatpush1.msra.mxu0 0.0
    %637 = vmatprep.subr.mxu0 0.0
    %638 = vmatpush1.msra.mxu0 0.0
    %639 = vmatprep.subr.mxu0 0.0
    %640 = vmatpush1.msra.mxu0 0.0
    %641 = vmatprep.subr.mxu0 0.0
    %642 = vmatpush1.msra.mxu0 0.0
    %643 = vmatprep.subr.mxu0 0.0
    %644 = vmatpush1.msra.mxu0 0.0
    %645 = vmatprep.subr.mxu0 0.0
    %646 = vmatpush1.msra.mxu0 0.0
    %647 = vmatprep.subr.mxu0 0.0
    %648 = vmatpush1.msra.mxu0 0.0
    %649 = vmatprep.subr.mxu0 0.0
    %650 = vmatpush1.msra.mxu0 0.0
    %651 = vmatprep.subr.mxu0 0.0
    %652 = vmatpush1.msra.mxu0 0.0
    %653 = vmatprep.subr.mxu0 0.0
    %654 = vmatpush1.msra.mxu0 0.0
    %655 = vmatprep.subr.mxu0 0.0
    %656 = vmatpush1.msra.mxu0 0.0
    %657 = vmatprep.subr.mxu0 0.0
    %658 = vmatpush1.msra.mxu0 0.0
    %659 = vmatprep.subr.mxu0 0.0
    %660 = vmatpush1.msra.mxu0 0.0
    %661 = vmatprep.subr.mxu0 0.0
    %662 = vmatpush1.msra.mxu0 0.0
    %663 = vmatprep.subr.mxu0 0.0
    %664 = vmatpush1.msra.mxu0 0.0
    %665 = vmatprep.subr.mxu0 0.0
    %666 = vmatpush1.msra.mxu0 0.0
    %667 = vmatprep.mubr.f32.mxu0 0.0
    %668 = vmatmul.mubr.f32.gmra.mrb[0].mxu0 %v601
    %v669 = vpop.f32.mrb[0].mxu0
    %v670 = vadd.f32 0.0, %v669
    %v671 = vpop.f32.mrb[0].mxu0
    %672 = vdwg.mxu0
    %v674 = vrot.slane %v594, 6
    %v676 = vadd.f32 %v257, %v674
    %v677 = vxor.u32 %v676, 2147483648
    %v678 = vmul.f32 %v677, 1.442695
    %v679 = vpow.pop %v678
    %v680 = vadd.f32 %v679, 1.0
    %v681 = vrcp.pop %v680
    %v682 = vmul.f32 1.0, %v681
    %v684 = vrot.slane %v670, 4
    %685 = vrot.lane.b32.xlu0 %v684, 96
    %v686 = vpop.permute.xlu0 %685
    %v688 = vadd.f32 %v263, %v686
    %v689 = vadd.f32 %v265, %v686
    %v690 = vxor.u32 %v688, 2147483648
    %v691 = vxor.u32 %v689, 2147483648
    %v692 = vmul.f32 %v690, 1.442695
    %v693 = vpow.pop %v692
    %v694 = vmul.f32 %v691, 1.442695
    %v695 = vpow.pop %v694
    %v696 = vadd.f32 %v693, 1.0
    %v697 = vadd.f32 %v695, 1.0
    %v698 = vrcp.pop %v696
    %v699 = vmul.f32 1.0, %v698
    %v700 = vrcp.pop %v697
    %v701 = vmul.f32 1.0, %v700
    %v702 = vadd.f32 %v594, %v470
    %v704 = vrot.slane %v702, 6
    %705 = vrot.lane.b32.xlu0 %v704, 64
    %v706 = vpop.permute.xlu0 %705
    %v708 = vmul.f32 %v682, %v706
    %710 = vrot.lane.b32.xlu0 %v708, 64
    %v711 = vpop.permute.xlu0 %710
    %v713 = vadd.f32 %v257, %v711
    %v714 = vtanh.pop %v713
    %v715 = vadd.f32 %v670, %v485
    %v717 = vrot.slane %v715, 4
    %718 = vrot.lane.b32.xlu0 %v717, 32
    %v719 = vpop.permute.xlu0 %718
    %v721 = vmul.f32 %v699, %v719
    %723 = vrot.lane.b32.xlu0 %v721, 64
    %v724 = vpop.permute.xlu0 %723
    %v726 = vadd.f32 %v265, %v724
    %v727 = vtanh.pop %v726
    %v729 = vrot.slane %v714, 2
    %v731 = vsub.f32 %v510, %v729
    %v733 = vrot.slane %v731, 6
    %734 = vrot.lane.b32.xlu0 %v733, 96
    %v735 = vpop.permute.xlu0 %734
    %v737 = vmul.f32 %v682, %v735
    %739 = vrot.lane.b32.xlu0 %v737, 32
    %v740 = vpop.permute.xlu0 %739
    %v742 = vadd.f32 %v714, %v740
    %v744 = vrot.slane %v727, 6
    %v746 = vsub.f32 %v521, %v744
    %v748 = vrot.slane %v746, 2
    %749 = vrot.lane.b32.xlu0 %v748, 96
    %v750 = vpop.permute.xlu0 %749
    %v752 = vmul.f32 %v701, %v750
    %754 = vrot.lane.b32.xlu0 %v752, 32
    %v755 = vpop.permute.xlu0 %754
    %v757 = vadd.f32 %v727, %v755
    %v759 = vrot.slane %v742, 2
    %760 = vrot.lane.b32.xlu0 %v759, 64
    %v761 = vpop.permute.xlu0 %760
    %v762 = vsel %vm183, %v761, 0
    %764 = vmatprep.subr.mxu0 0.0
    %765 = vmatpush1.msra.mxu0 %v152
    %766 = vmatprep.subr.mxu0 0.0
    %767 = vmatpush1.msra.mxu0 %v153
    %768 = vmatprep.subr.mxu0 0.0
    %769 = vmatpush1.msra.mxu0 %v154
    %770 = vmatprep.subr.mxu0 0.0
    %771 = vmatpush1.msra.mxu0 %v155
    %772 = vmatprep.subr.mxu0 0.0
    %773 = vmatpush1.msra.mxu0 0.0
    %774 = vmatprep.subr.mxu0 0.0
    %775 = vmatpush1.msra.mxu0 0.0
    %776 = vmatprep.subr.mxu0 0.0
    %777 = vmatpush1.msra.mxu0 0.0
    %778 = vmatprep.subr.mxu0 0.0
    %779 = vmatpush1.msra.mxu0 0.0
    %780 = vmatprep.subr.mxu0 0.0
    %781 = vmatpush1.msra.mxu0 0.0
    %782 = vmatprep.subr.mxu0 0.0
    %783 = vmatpush1.msra.mxu0 0.0
    %784 = vmatprep.subr.mxu0 0.0
    %785 = vmatpush1.msra.mxu0 0.0
    %786 = vmatprep.subr.mxu0 0.0
    %787 = vmatpush1.msra.mxu0 0.0
    %788 = vmatprep.subr.mxu0 0.0
    %789 = vmatpush1.msra.mxu0 0.0
    %790 = vmatprep.subr.mxu0 0.0
    %791 = vmatpush1.msra.mxu0 0.0
    %792 = vmatprep.subr.mxu0 0.0
    %793 = vmatpush1.msra.mxu0 0.0
    %794 = vmatprep.subr.mxu0 0.0
    %795 = vmatpush1.msra.mxu0 0.0
    %796 = vmatprep.subr.mxu0 0.0
    %797 = vmatpush1.msra.mxu0 0.0
    %798 = vmatprep.subr.mxu0 0.0
    %799 = vmatpush1.msra.mxu0 0.0
    %800 = vmatprep.subr.mxu0 0.0
    %801 = vmatpush1.msra.mxu0 0.0
    %802 = vmatprep.subr.mxu0 0.0
    %803 = vmatpush1.msra.mxu0 0.0
    %804 = vmatprep.subr.mxu0 0.0
    %805 = vmatpush1.msra.mxu0 0.0
    %806 = vmatprep.subr.mxu0 0.0
    %807 = vmatpush1.msra.mxu0 0.0
    %808 = vmatprep.subr.mxu0 0.0
    %809 = vmatpush1.msra.mxu0 0.0
    %810 = vmatprep.subr.mxu0 0.0
    %811 = vmatpush1.msra.mxu0 0.0
    %812 = vmatprep.subr.mxu0 0.0
    %813 = vmatpush1.msra.mxu0 0.0
    %814 = vmatprep.subr.mxu0 0.0
    %815 = vmatpush1.msra.mxu0 0.0
    %816 = vmatprep.subr.mxu0 0.0
    %817 = vmatpush1.msra.mxu0 0.0
    %818 = vmatprep.subr.mxu0 0.0
    %819 = vmatpush1.msra.mxu0 0.0
    %820 = vmatprep.subr.mxu0 0.0
    %821 = vmatpush1.msra.mxu0 0.0
    %822 = vmatprep.subr.mxu0 0.0
    %823 = vmatpush1.msra.mxu0 0.0
    %824 = vmatprep.subr.mxu0 0.0
    %825 = vmatpush1.msra.mxu0 0.0
    %826 = vmatprep.subr.mxu0 0.0
    %827 = vmatpush1.msra.mxu0 0.0
    %828 = vmatprep.mubr.f32.mxu0 0.0
    %829 = vmatmul.mubr.f32.gmra.mrb[0].mxu0 %v762
    %v830 = vpop.f32.mrb[0].mxu0
    %v831 = vadd.f32 0.0, %v830
    %v832 = vpop.f32.mrb[0].mxu0
    %833 = vdwg.mxu0
    %v835 = vrot.slane %v757, 4
    %836 = vrot.lane.b32.xlu0 %v835, 96
    %v837 = vpop.permute.xlu0 %836
    %v838 = vsel %vm183, %v837, 0
    %840 = vmatprep.subr.mxu0 0.0
    %841 = vmatpush1.msra.mxu0 %v364
    %842 = vmatprep.subr.mxu0 0.0
    %843 = vmatpush1.msra.mxu0 %v365
    %844 = vmatprep.subr.mxu0 0.0
    %845 = vmatpush1.msra.mxu0 %v366
    %846 = vmatprep.subr.mxu0 0.0
    %847 = vmatpush1.msra.mxu0 %v367
    %848 = vmatprep.subr.mxu0 0.0
    %849 = vmatpush1.msra.mxu0 0.0
    %850 = vmatprep.subr.mxu0 0.0
    %851 = vmatpush1.msra.mxu0 0.0
    %852 = vmatprep.subr.mxu0 0.0
    %853 = vmatpush1.msra.mxu0 0.0
    %854 = vmatprep.subr.mxu0 0.0
    %855 = vmatpush1.msra.mxu0 0.0
    %856 = vmatprep.subr.mxu0 0.0
    %857 = vmatpush1.msra.mxu0 0.0
    %858 = vmatprep.subr.mxu0 0.0
    %859 = vmatpush1.msra.mxu0 0.0
    %860 = vmatprep.subr.mxu0 0.0
    %861 = vmatpush1.msra.mxu0 0.0
    %862 = vmatprep.subr.mxu0 0.0
    %863 = vmatpush1.msra.mxu0 0.0
    %864 = vmatprep.subr.mxu0 0.0
    %865 = vmatpush1.msra.mxu0 0.0
    %866 = vmatprep.subr.mxu0 0.0
    %867 = vmatpush1.msra.mxu0 0.0
    %868 = vmatprep.subr.mxu0 0.0
    %869 = vmatpush1.msra.mxu0 0.0
    %870 = vmatprep.subr.mxu0 0.0
    %871 = vmatpush1.msra.mxu0 0.0
    %872 = vmatprep.subr.mxu0 0.0
    %873 = vmatpush1.msra.mxu0 0.0
    %874 = vmatprep.subr.mxu0 0.0
    %875 = vmatpush1.msra.mxu0 0.0
    %876 = vmatprep.subr.mxu0 0.0
    %877 = vmatpush1.msra.mxu0 0.0
    %878 = vmatprep.subr.mxu0 0.0
    %879 = vmatpush1.msra.mxu0 0.0
    %880 = vmatprep.subr.mxu0 0.0
    %881 = vmatpush1.msra.mxu0 0.0
    %882 = vmatprep.subr.mxu0 0.0
    %883 = vmatpush1.msra.mxu0 0.0
    %884 = vmatprep.subr.mxu0 0.0
    %885 = vmatpush1.msra.mxu0 0.0
    %886 = vmatprep.subr.mxu0 0.0
    %887 = vmatpush1.msra.mxu0 0.0
    %888 = vmatprep.subr.mxu0 0.0
    %889 = vmatpush1.msra.mxu0 0.0
    %890 = vmatprep.subr.mxu0 0.0
    %891 = vmatpush1.msra.mxu0 0.0
    %892 = vmatprep.subr.mxu0 0.0
    %893 = vmatpush1.msra.mxu0 0.0
    %894 = vmatprep.subr.mxu0 0.0
    %895 = vmatpush1.msra.mxu0 0.0
    %896 = vmatprep.subr.mxu0 0.0
    %897 = vmatpush1.msra.mxu0 0.0
    %898 = vmatprep.subr.mxu0 0.0
    %899 = vmatpush1.msra.mxu0 0.0
    %900 = vmatprep.subr.mxu0 0.0
    %901 = vmatpush1.msra.mxu0 0.0
    %902 = vmatprep.subr.mxu0 0.0
    %903 = vmatpush1.msra.mxu0 0.0
    %904 = vmatprep.mubr.f32.mxu0 0.0
    %905 = vmatmul.mubr.f32.gmra.mrb[0].mxu0 %v838
    %v906 = vpop.f32.mrb[0].mxu0
    %v907 = vadd.f32 0.0, %v906
    %v908 = vpop.f32.mrb[0].mxu0
    %909 = vdwg.mxu0
    %v911 = vrot.slane %v831, 4
    %v913 = vadd.f32 %v257, %v911
    %v914 = vxor.u32 %v913, 2147483648
    %v915 = vmul.f32 %v914, 1.442695
    %v916 = vpow.pop %v915
    %v917 = vadd.f32 %v916, 1.0
    %v918 = vrcp.pop %v917
    %v919 = vmul.f32 1.0, %v918
    %v921 = vrot.slane %v907, 6
    %922 = vrot.lane.b32.xlu0 %v921, 96
    %v923 = vpop.permute.xlu0 %922
    %v925 = vadd.f32 %v263, %v923
    %v926 = vadd.f32 %v265, %v923
    %v927 = vxor.u32 %v925, 2147483648
    %v928 = vxor.u32 %v926, 2147483648
    %v929 = vmul.f32 %v927, 1.442695
    %v930 = vpow.pop %v929
    %v931 = vmul.f32 %v928, 1.442695
    %v932 = vpow.pop %v931
    %v933 = vadd.f32 %v930, 1.0
    %v934 = vadd.f32 %v932, 1.0
    %v935 = vrcp.pop %v933
    %v936 = vmul.f32 1.0, %v935
    %v937 = vrcp.pop %v934
    %v938 = vmul.f32 1.0, %v937
    %v939 = vadd.f32 %v831, %v470
    %v941 = vrot.slane %v939, 4
    %942 = vrot.lane.b32.xlu0 %v941, 64
    %v943 = vpop.permute.xlu0 %942
    %v945 = vmul.f32 %v919, %v943
    %947 = vrot.lane.b32.xlu0 %v945, 64
    %v948 = vpop.permute.xlu0 %947
    %v950 = vadd.f32 %v257, %v948
    %v951 = vtanh.pop %v950
    %v952 = vadd.f32 %v907, %v485
    %v954 = vrot.slane %v952, 6
    %955 = vrot.lane.b32.xlu0 %v954, 32
    %v956 = vpop.permute.xlu0 %955
    %v958 = vmul.f32 %v936, %v956
    %960 = vrot.lane.b32.xlu0 %v958, 64
    %v961 = vpop.permute.xlu0 %960
    %v963 = vadd.f32 %v265, %v961
    %v964 = vtanh.pop %v963
    %v966 = vrot.slane %v951, 2
    %v968 = vsub.f32 %v742, %v966
    %v970 = vrot.slane %v968, 6
    %971 = vrot.lane.b32.xlu0 %v970, 96
    %v972 = vpop.permute.xlu0 %971
    %v974 = vmul.f32 %v919, %v972
    %976 = vrot.lane.b32.xlu0 %v974, 32
    %v977 = vpop.permute.xlu0 %976
    %v979 = vadd.f32 %v951, %v977
    %v981 = vrot.slane %v964, 6
    %v983 = vsub.f32 %v757, %v981
    %v985 = vrot.slane %v983, 2
    %986 = vrot.lane.b32.xlu0 %v985, 96
    %v987 = vpop.permute.xlu0 %986
    %v989 = vmul.f32 %v938, %v987
    %991 = vrot.lane.b32.xlu0 %v989, 32
    %v992 = vpop.permute.xlu0 %991
    %v994 = vadd.f32 %v964, %v992
    %v996 = vrot.slane %v979, 4
    %997 = vrot.lane.b32.xlu0 %v996, 64
    %v998 = vpop.permute.xlu0 %997
    %v999 = vsel %vm183, %v998, 0
    %1001 = vmatprep.subr.mxu0 0.0
    %1002 = vmatpush1.msra.mxu0 %v152
    %1003 = vmatprep.subr.mxu0 0.0
    %1004 = vmatpush1.msra.mxu0 %v153
    %1005 = vmatprep.subr.mxu0 0.0
    %1006 = vmatpush1.msra.mxu0 %v154
    %1007 = vmatprep.subr.mxu0 0.0
    %1008 = vmatpush1.msra.mxu0 %v155
    %1009 = vmatprep.subr.mxu0 0.0
    %1010 = vmatpush1.msra.mxu0 0.0
    %1011 = vmatprep.subr.mxu0 0.0
    %1012 = vmatpush1.msra.mxu0 0.0
    %1013 = vmatprep.subr.mxu0 0.0
    %1014 = vmatpush1.msra.mxu0 0.0
    %1015 = vmatprep.subr.mxu0 0.0
    %1016 = vmatpush1.msra.mxu0 0.0
    %1017 = vmatprep.subr.mxu0 0.0
    %1018 = vmatpush1.msra.mxu0 0.0
    %1019 = vmatprep.subr.mxu0 0.0
    %1020 = vmatpush1.msra.mxu0 0.0
    %1021 = vmatprep.subr.mxu0 0.0
    %1022 = vmatpush1.msra.mxu0 0.0
    %1023 = vmatprep.subr.mxu0 0.0
    %1024 = vmatpush1.msra.mxu0 0.0
    %1025 = vmatprep.subr.mxu0 0.0
    %1026 = vmatpush1.msra.mxu0 0.0
    %1027 = vmatprep.subr.mxu0 0.0
    %1028 = vmatpush1.msra.mxu0 0.0
    %1029 = vmatprep.subr.mxu0 0.0
    %1030 = vmatpush1.msra.mxu0 0.0
    %1031 = vmatprep.subr.mxu0 0.0
    %1032 = vmatpush1.msra.mxu0 0.0
    %1033 = vmatprep.subr.mxu0 0.0
    %1034 = vmatpush1.msra.mxu0 0.0
    %1035 = vmatprep.subr.mxu0 0.0
    %1036 = vmatpush1.msra.mxu0 0.0
    %1037 = vmatprep.subr.mxu0 0.0
    %1038 = vmatpush1.msra.mxu0 0.0
    %1039 = vmatprep.subr.mxu0 0.0
    %1040 = vmatpush1.msra.mxu0 0.0
    %1041 = vmatprep.subr.mxu0 0.0
    %1042 = vmatpush1.msra.mxu0 0.0
    %1043 = vmatprep.subr.mxu0 0.0
    %1044 = vmatpush1.msra.mxu0 0.0
    %1045 = vmatprep.subr.mxu0 0.0
    %1046 = vmatpush1.msra.mxu0 0.0
    %1047 = vmatprep.subr.mxu0 0.0
    %1048 = vmatpush1.msra.mxu0 0.0
    %1049 = vmatprep.subr.mxu0 0.0
    %1050 = vmatpush1.msra.mxu0 0.0
    %1051 = vmatprep.subr.mxu0 0.0
    %1052 = vmatpush1.msra.mxu0 0.0
    %1053 = vmatprep.subr.mxu0 0.0
    %1054 = vmatpush1.msra.mxu0 0.0
    %1055 = vmatprep.subr.mxu0 0.0
    %1056 = vmatpush1.msra.mxu0 0.0
    %1057 = vmatprep.subr.mxu0 0.0
    %1058 = vmatpush1.msra.mxu0 0.0
    %1059 = vmatprep.subr.mxu0 0.0
    %1060 = vmatpush1.msra.mxu0 0.0
    %1061 = vmatprep.subr.mxu0 0.0
    %1062 = vmatpush1.msra.mxu0 0.0
    %1063 = vmatprep.subr.mxu0 0.0
    %1064 = vmatpush1.msra.mxu0 0.0
    %1065 = vmatprep.mubr.f32.mxu0 0.0
    %1066 = vmatmul.mubr.f32.gmra.mrb[0].mxu0 %v999
    %v1067 = vpop.f32.mrb[0].mxu0
    %v1068 = vadd.f32 0.0, %v1067
    %v1069 = vpop.f32.mrb[0].mxu0
    %1070 = vdwg.mxu0
    %v1072 = vrot.slane %v994, 2
    %1073 = vrot.lane.b32.xlu0 %v1072, 96
    %v1074 = vpop.permute.xlu0 %1073
    %v1075 = vsel %vm183, %v1074, 0
    %1077 = vmatprep.subr.mxu0 0.0
    %1078 = vmatpush1.msra.mxu0 %v364
    %1079 = vmatprep.subr.mxu0 0.0
    %1080 = vmatpush1.msra.mxu0 %v365
    %1081 = vmatprep.subr.mxu0 0.0
    %1082 = vmatpush1.msra.mxu0 %v366
    %1083 = vmatprep.subr.mxu0 0.0
    %1084 = vmatpush1.msra.mxu0 %v367
    %1085 = vmatprep.subr.mxu0 0.0
    %1086 = vmatpush1.msra.mxu0 0.0
    %1087 = vmatprep.subr.mxu0 0.0
    %1088 = vmatpush1.msra.mxu0 0.0
    %1089 = vmatprep.subr.mxu0 0.0
    %1090 = vmatpush1.msra.mxu0 0.0
    %1091 = vmatprep.subr.mxu0 0.0
    %1092 = vmatpush1.msra.mxu0 0.0
    %1093 = vmatprep.subr.mxu0 0.0
    %1094 = vmatpush1.msra.mxu0 0.0
    %1095 = vmatprep.subr.mxu0 0.0
    %1096 = vmatpush1.msra.mxu0 0.0
    %1097 = vmatprep.subr.mxu0 0.0
    %1098 = vmatpush1.msra.mxu0 0.0
    %1099 = vmatprep.subr.mxu0 0.0
    %1100 = vmatpush1.msra.mxu0 0.0
    %1101 = vmatprep.subr.mxu0 0.0
    %1102 = vmatpush1.msra.mxu0 0.0
    %1103 = vmatprep.subr.mxu0 0.0
    %1104 = vmatpush1.msra.mxu0 0.0
    %1105 = vmatprep.subr.mxu0 0.0
    %1106 = vmatpush1.msra.mxu0 0.0
    %1107 = vmatprep.subr.mxu0 0.0
    %1108 = vmatpush1.msra.mxu0 0.0
    %1109 = vmatprep.subr.mxu0 0.0
    %1110 = vmatpush1.msra.mxu0 0.0
    %1111 = vmatprep.subr.mxu0 0.0
    %1112 = vmatpush1.msra.mxu0 0.0
    %1113 = vmatprep.subr.mxu0 0.0
    %1114 = vmatpush1.msra.mxu0 0.0
    %1115 = vmatprep.subr.mxu0 0.0
    %1116 = vmatpush1.msra.mxu0 0.0
    %1117 = vmatprep.subr.mxu0 0.0
    %1118 = vmatpush1.msra.mxu0 0.0
    %1119 = vmatprep.subr.mxu0 0.0
    %1120 = vmatpush1.msra.mxu0 0.0
    %1121 = vmatprep.subr.mxu0 0.0
    %1122 = vmatpush1.msra.mxu0 0.0
    %1123 = vmatprep.subr.mxu0 0.0
    %1124 = vmatpush1.msra.mxu0 0.0
    %1125 = vmatprep.subr.mxu0 0.0
    %1126 = vmatpush1.msra.mxu0 0.0
    %1127 = vmatprep.subr.mxu0 0.0
    %1128 = vmatpush1.msra.mxu0 0.0
    %1129 = vmatprep.subr.mxu0 0.0
    %1130 = vmatpush1.msra.mxu0 0.0
    %1131 = vmatprep.subr.mxu0 0.0
    %1132 = vmatpush1.msra.mxu0 0.0
    %1133 = vmatprep.subr.mxu0 0.0
    %1134 = vmatpush1.msra.mxu0 0.0
    %1135 = vmatprep.subr.mxu0 0.0
    %1136 = vmatpush1.msra.mxu0 0.0
    %1137 = vmatprep.subr.mxu0 0.0
    %1138 = vmatpush1.msra.mxu0 0.0
    %1139 = vmatprep.subr.mxu0 0.0
    %1140 = vmatpush1.msra.mxu0 0.0
    %1141 = vmatprep.mubr.f32.mxu0 0.0
    %1142 = vmatmul.mubr.f32.gmra.mrb[0].mxu0 %v1075
    %v1143 = vpop.f32.mrb[0].mxu0
    %v1144 = vadd.f32 0.0, %v1143
    %v1145 = vpop.f32.mrb[0].mxu0
    %1146 = vdwg.mxu0
    %v1148 = vrot.slane %v1068, 2
    %v1150 = vadd.f32 %v257, %v1148
    %v1151 = vxor.u32 %v1150, 2147483648
    %v1152 = vmul.f32 %v1151, 1.442695
    %v1153 = vpow.pop %v1152
    %v1154 = vadd.f32 %v1153, 1.0
    %v1155 = vrcp.pop %v1154
    %v1156 = vmul.f32 1.0, %v1155
    %1158 = vrot.lane.b32.xlu0 %v1144, 96
    %v1159 = vpop.permute.xlu0 %1158
    %v1161 = vadd.f32 %v263, %v1159
    %v1162 = vadd.f32 %v265, %v1159
    %v1163 = vxor.u32 %v1161, 2147483648
    %v1164 = vxor.u32 %v1162, 2147483648
    %v1165 = vmul.f32 %v1163, 1.442695
    %v1166 = vpow.pop %v1165
    %v1167 = vmul.f32 %v1164, 1.442695
    %v1168 = vpow.pop %v1167
    %v1169 = vadd.f32 %v1166, 1.0
    %v1170 = vadd.f32 %v1168, 1.0
    %v1171 = vrcp.pop %v1169
    %v1172 = vmul.f32 1.0, %v1171
    %v1173 = vrcp.pop %v1170
    %v1174 = vmul.f32 1.0, %v1173
    %v1175 = vadd.f32 %v1068, %v470
    %v1177 = vrot.slane %v1175, 2
    %1178 = vrot.lane.b32.xlu0 %v1177, 64
    %v1179 = vpop.permute.xlu0 %1178
    %v1181 = vmul.f32 %v1156, %v1179
    %1183 = vrot.lane.b32.xlu0 %v1181, 64
    %v1184 = vpop.permute.xlu0 %1183
    %v1186 = vadd.f32 %v257, %v1184
    %v1187 = vtanh.pop %v1186
    %v1188 = vadd.f32 %v1144, %v485
    %1190 = vrot.lane.b32.xlu0 %v1188, 32
    %v1191 = vpop.permute.xlu0 %1190
    %v1193 = vmul.f32 %v1172, %v1191
    %1195 = vrot.lane.b32.xlu0 %v1193, 64
    %v1196 = vpop.permute.xlu0 %1195
    %v1198 = vadd.f32 %v265, %v1196
    %v1199 = vtanh.pop %v1198
    %v1201 = vrot.slane %v1187, 2
    %v1203 = vsub.f32 %v979, %v1201
    %v1205 = vrot.slane %v1203, 6
    %1206 = vrot.lane.b32.xlu0 %v1205, 96
    %v1207 = vpop.permute.xlu0 %1206
    %v1209 = vmul.f32 %v1156, %v1207
    %1211 = vrot.lane.b32.xlu0 %v1209, 32
    %v1212 = vpop.permute.xlu0 %1211
    %v1214 = vadd.f32 %v1187, %v1212
    %v1216 = vrot.slane %v1199, 6
    %v1218 = vsub.f32 %v994, %v1216
    %v1220 = vrot.slane %v1218, 2
    %1221 = vrot.lane.b32.xlu0 %v1220, 96
    %v1222 = vpop.permute.xlu0 %1221
    %v1224 = vmul.f32 %v1174, %v1222
    %1226 = vrot.lane.b32.xlu0 %v1224, 32
    %v1227 = vpop.permute.xlu0 %1226
    %v1229 = vadd.f32 %v1199, %v1227
    %v1231 = vrot.slane %v1214, 6
    %1232 = vrot.lane.b32.xlu0 %v1231, 64
    %v1233 = vpop.permute.xlu0 %1232
    %v1234 = vsel %vm183, %v1233, 0
    %1236 = vmatprep.subr.mxu0 0.0
    %1237 = vmatpush1.msra.mxu0 %v152
    %1238 = vmatprep.subr.mxu0 0.0
    %1239 = vmatpush1.msra.mxu0 %v153
    %1240 = vmatprep.subr.mxu0 0.0
    %1241 = vmatpush1.msra.mxu0 %v154
    %1242 = vmatprep.subr.mxu0 0.0
    %1243 = vmatpush1.msra.mxu0 %v155
    %1244 = vmatprep.subr.mxu0 0.0
    %1245 = vmatpush1.msra.mxu0 0.0
    %1246 = vmatprep.subr.mxu0 0.0
    %1247 = vmatpush1.msra.mxu0 0.0
    %1248 = vmatprep.subr.mxu0 0.0
    %1249 = vmatpush1.msra.mxu0 0.0
    %1250 = vmatprep.subr.mxu0 0.0
    %1251 = vmatpush1.msra.mxu0 0.0
    %1252 = vmatprep.subr.mxu0 0.0
    %1253 = vmatpush1.msra.mxu0 0.0
    %1254 = vmatprep.subr.mxu0 0.0
    %1255 = vmatpush1.msra.mxu0 0.0
    %1256 = vmatprep.subr.mxu0 0.0
    %1257 = vmatpush1.msra.mxu0 0.0
    %1258 = vmatprep.subr.mxu0 0.0
    %1259 = vmatpush1.msra.mxu0 0.0
    %1260 = vmatprep.subr.mxu0 0.0
    %1261 = vmatpush1.msra.mxu0 0.0
    %1262 = vmatprep.subr.mxu0 0.0
    %1263 = vmatpush1.msra.mxu0 0.0
    %1264 = vmatprep.subr.mxu0 0.0
    %1265 = vmatpush1.msra.mxu0 0.0
    %1266 = vmatprep.subr.mxu0 0.0
    %1267 = vmatpush1.msra.mxu0 0.0
    %1268 = vmatprep.subr.mxu0 0.0
    %1269 = vmatpush1.msra.mxu0 0.0
    %1270 = vmatprep.subr.mxu0 0.0
    %1271 = vmatpush1.msra.mxu0 0.0
    %1272 = vmatprep.subr.mxu0 0.0
    %1273 = vmatpush1.msra.mxu0 0.0
    %1274 = vmatprep.subr.mxu0 0.0
    %1275 = vmatpush1.msra.mxu0 0.0
    %1276 = vmatprep.subr.mxu0 0.0
    %1277 = vmatpush1.msra.mxu0 0.0
    %1278 = vmatprep.subr.mxu0 0.0
    %1279 = vmatpush1.msra.mxu0 0.0
    %1280 = vmatprep.subr.mxu0 0.0
    %1281 = vmatpush1.msra.mxu0 0.0
    %1282 = vmatprep.subr.mxu0 0.0
    %1283 = vmatpush1.msra.mxu0 0.0
    %1284 = vmatprep.subr.mxu0 0.0
    %1285 = vmatpush1.msra.mxu0 0.0
    %1286 = vmatprep.subr.mxu0 0.0
    %1287 = vmatpush1.msra.mxu0 0.0
    %1288 = vmatprep.subr.mxu0 0.0
    %1289 = vmatpush1.msra.mxu0 0.0
    %1290 = vmatprep.subr.mxu0 0.0
    %1291 = vmatpush1.msra.mxu0 0.0
    %1292 = vmatprep.subr.mxu0 0.0
    %1293 = vmatpush1.msra.mxu0 0.0
    %1294 = vmatprep.subr.mxu0 0.0
    %1295 = vmatpush1.msra.mxu0 0.0
    %1296 = vmatprep.subr.mxu0 0.0
    %1297 = vmatpush1.msra.mxu0 0.0
    %1298 = vmatprep.subr.mxu0 0.0
    %1299 = vmatpush1.msra.mxu0 0.0
    %1300 = vmatprep.mubr.f32.mxu0 0.0
    %1301 = vmatmul.mubr.f32.gmra.mrb[0].mxu0 %v1234
    %v1302 = vpop.f32.mrb[0].mxu0
    %v1303 = vadd.f32 0.0, %v1302
    %v1304 = vpop.f32.mrb[0].mxu0
    %1305 = vdwg.mxu0
    %1307 = vrot.lane.b32.xlu0 %v1229, 96
    %v1308 = vpop.permute.xlu0 %1307
    %v1309 = vsel %vm183, %v1308, 0
    %1311 = vmatprep.subr.mxu0 0.0
    %1312 = vmatpush1.msra.mxu0 %v364
    %1313 = vmatprep.subr.mxu0 0.0
    %1314 = vmatpush1.msra.mxu0 %v365
    %1315 = vmatprep.subr.mxu0 0.0
    %1316 = vmatpush1.msra.mxu0 %v366
    %1317 = vmatprep.subr.mxu0 0.0
    %1318 = vmatpush1.msra.mxu0 %v367
    %1319 = vmatprep.subr.mxu0 0.0
    %1320 = vmatpush1.msra.mxu0 0.0
    %1321 = vmatprep.subr.mxu0 0.0
    %1322 = vmatpush1.msra.mxu0 0.0
    %1323 = vmatprep.subr.mxu0 0.0
    %1324 = vmatpush1.msra.mxu0 0.0
    %1325 = vmatprep.subr.mxu0 0.0
    %1326 = vmatpush1.msra.mxu0 0.0
    %1327 = vmatprep.subr.mxu0 0.0
    %1328 = vmatpush1.msra.mxu0 0.0
    %1329 = vmatprep.subr.mxu0 0.0
    %1330 = vmatpush1.msra.mxu0 0.0
    %1331 = vmatprep.subr.mxu0 0.0
    %1332 = vmatpush1.msra.mxu0 0.0
    %1333 = vmatprep.subr.mxu0 0.0
    %1334 = vmatpush1.msra.mxu0 0.0
    %1335 = vmatprep.subr.mxu0 0.0
    %1336 = vmatpush1.msra.mxu0 0.0
    %1337 = vmatprep.subr.mxu0 0.0
    %1338 = vmatpush1.msra.mxu0 0.0
    %1339 = vmatprep.subr.mxu0 0.0
    %1340 = vmatpush1.msra.mxu0 0.0
    %1341 = vmatprep.subr.mxu0 0.0
    %1342 = vmatpush1.msra.mxu0 0.0
    %1343 = vmatprep.subr.mxu0 0.0
    %1344 = vmatpush1.msra.mxu0 0.0
    %1345 = vmatprep.subr.mxu0 0.0
    %1346 = vmatpush1.msra.mxu0 0.0
    %1347 = vmatprep.subr.mxu0 0.0
    %1348 = vmatpush1.msra.mxu0 0.0
    %1349 = vmatprep.subr.mxu0 0.0
    %1350 = vmatpush1.msra.mxu0 0.0
    %1351 = vmatprep.subr.mxu0 0.0
    %1352 = vmatpush1.msra.mxu0 0.0
    %1353 = vmatprep.subr.mxu0 0.0
    %1354 = vmatpush1.msra.mxu0 0.0
    %1355 = vmatprep.subr.mxu0 0.0
    %1356 = vmatpush1.msra.mxu0 0.0
    %1357 = vmatprep.subr.mxu0 0.0
    %1358 = vmatpush1.msra.mxu0 0.0
    %1359 = vmatprep.subr.mxu0 0.0
    %1360 = vmatpush1.msra.mxu0 0.0
    %1361 = vmatprep.subr.mxu0 0.0
    %1362 = vmatpush1.msra.mxu0 0.0
    %1363 = vmatprep.subr.mxu0 0.0
    %1364 = vmatpush1.msra.mxu0 0.0
    %1365 = vmatprep.subr.mxu0 0.0
    %1366 = vmatpush1.msra.mxu0 0.0
    %1367 = vmatprep.subr.mxu0 0.0
    %1368 = vmatpush1.msra.mxu0 0.0
    %1369 = vmatprep.subr.mxu0 0.0
    %1370 = vmatpush1.msra.mxu0 0.0
    %1371 = vmatprep.subr.mxu0 0.0
    %1372 = vmatpush1.msra.mxu0 0.0
    %1373 = vmatprep.subr.mxu0 0.0
    %1374 = vmatpush1.msra.mxu0 0.0
    %1375 = vmatprep.mubr.f32.mxu0 0.0
    %1376 = vmatmul.mubr.f32.gmra.mrb[0].mxu0 %v1309
    %v1377 = vpop.f32.mrb[0].mxu0
    %v1378 = vadd.f32 0.0, %v1377
    %v1379 = vpop.f32.mrb[0].mxu0
    %1380 = vdwg.mxu0
    %v1381 = vadd.f32 %v263, %v1303
    %v1382 = vxor.u32 %v1381, 2147483648
    %v1383 = vmul.f32 %v1382, 1.442695
    %v1384 = vpow.pop %v1383
    %v1385 = vadd.f32 %v1384, 1.0
    %v1386 = vrcp.pop %v1385
    %v1387 = vmul.f32 1.0, %v1386
    %v1389 = vrot.slane %v1378, 2
    %1390 = vrot.lane.b32.xlu0 %v1389, 96
    %v1391 = vpop.permute.xlu0 %1390
    %v1393 = vadd.f32 %v257, %v1391
    %v1394 = vadd.f32 %v259, %v1391
    %v1395 = vxor.u32 %v1393, 2147483648
    %v1396 = vxor.u32 %v1394, 2147483648
    %v1397 = vmul.f32 %v1395, 1.442695
    %v1398 = vpow.pop %v1397
    %v1399 = vmul.f32 %v1396, 1.442695
    %v1400 = vpow.pop %v1399
    %v1401 = vadd.f32 %v1398, 1.0
    %v1402 = vadd.f32 %v1400, 1.0
    %v1403 = vrcp.pop %v1401
    %v1404 = vmul.f32 1.0, %v1403
    %v1405 = vrcp.pop %v1402
    %v1406 = vmul.f32 1.0, %v1405
    %v1407 = vadd.f32 %v1303, %v470
    %1409 = vrot.lane.b32.xlu0 %v1407, 64
    %v1410 = vpop.permute.xlu0 %1409
    %v1412 = vmul.f32 %v1387, %v1410
    %1414 = vrot.lane.b32.xlu0 %v1412, 64
    %v1415 = vpop.permute.xlu0 %1414
    %v1417 = vadd.f32 %v263, %v1415
    %v1418 = vtanh.pop %v1417
    %v1419 = vadd.f32 %v1378, %v485
    %v1421 = vrot.slane %v1419, 2
    %1422 = vrot.lane.b32.xlu0 %v1421, 32
    %v1423 = vpop.permute.xlu0 %1422
    %v1425 = vmul.f32 %v1404, %v1423
    %1427 = vrot.lane.b32.xlu0 %v1425, 64
    %v1428 = vpop.permute.xlu0 %1427
    %v1430 = vadd.f32 %v259, %v1428
    %v1431 = vtanh.pop %v1430
    %v1433 = vrot.slane %v1418, 2
    %v1435 = vsub.f32 %v1214, %v1433
    %v1437 = vrot.slane %v1435, 6
    %1438 = vrot.lane.b32.xlu0 %v1437, 96
    %v1439 = vpop.permute.xlu0 %1438
    %v1441 = vmul.f32 %v1387, %v1439
    %1443 = vrot.lane.b32.xlu0 %v1441, 32
    %v1444 = vpop.permute.xlu0 %1443
    %v1446 = vadd.f32 %v1418, %v1444
    %v1448 = vrot.slane %v1431, 6
    %v1450 = vsub.f32 %v1229, %v1448
    %v1452 = vrot.slane %v1450, 2
    %1453 = vrot.lane.b32.xlu0 %v1452, 96
    %v1454 = vpop.permute.xlu0 %1453
    %v1456 = vmul.f32 %v1406, %v1454
    %1458 = vrot.lane.b32.xlu0 %v1456, 32
    %v1459 = vpop.permute.xlu0 %1458
    %v1461 = vadd.f32 %v1431, %v1459
    %1463 = vrot.lane.b32.xlu0 %v1446, 64
    %v1464 = vpop.permute.xlu0 %1463
    %v1465 = vsel %vm183, %v1464, 0
    %1467 = vmatprep.subr.mxu0 0.0
    %1468 = vmatpush1.msra.mxu0 %v152
    %1469 = vmatprep.subr.mxu0 0.0
    %1470 = vmatpush1.msra.mxu0 %v153
    %1471 = vmatprep.subr.mxu0 0.0
    %1472 = vmatpush1.msra.mxu0 %v154
    %1473 = vmatprep.subr.mxu0 0.0
    %1474 = vmatpush1.msra.mxu0 %v155
    %1475 = vmatprep.subr.mxu0 0.0
    %1476 = vmatpush1.msra.mxu0 0.0
    %1477 = vmatprep.subr.mxu0 0.0
    %1478 = vmatpush1.msra.mxu0 0.0
    %1479 = vmatprep.subr.mxu0 0.0
    %1480 = vmatpush1.msra.mxu0 0.0
    %1481 = vmatprep.subr.mxu0 0.0
    %1482 = vmatpush1.msra.mxu0 0.0
    %1483 = vmatprep.subr.mxu0 0.0
    %1484 = vmatpush1.msra.mxu0 0.0
    %1485 = vmatprep.subr.mxu0 0.0
    %1486 = vmatpush1.msra.mxu0 0.0
    %1487 = vmatprep.subr.mxu0 0.0
    %1488 = vmatpush1.msra.mxu0 0.0
    %1489 = vmatprep.subr.mxu0 0.0
    %1490 = vmatpush1.msra.mxu0 0.0
    %1491 = vmatprep.subr.mxu0 0.0
    %1492 = vmatpush1.msra.mxu0 0.0
    %1493 = vmatprep.subr.mxu0 0.0
    %1494 = vmatpush1.msra.mxu0 0.0
    %1495 = vmatprep.subr.mxu0 0.0
    %1496 = vmatpush1.msra.mxu0 0.0
    %1497 = vmatprep.subr.mxu0 0.0
    %1498 = vmatpush1.msra.mxu0 0.0
    %1499 = vmatprep.subr.mxu0 0.0
    %1500 = vmatpush1.msra.mxu0 0.0
    %1501 = vmatprep.subr.mxu0 0.0
    %1502 = vmatpush1.msra.mxu0 0.0
    %1503 = vmatprep.subr.mxu0 0.0
    %1504 = vmatpush1.msra.mxu0 0.0
    %1505 = vmatprep.subr.mxu0 0.0
    %1506 = vmatpush1.msra.mxu0 0.0
    %1507 = vmatprep.subr.mxu0 0.0
    %1508 = vmatpush1.msra.mxu0 0.0
    %1509 = vmatprep.subr.mxu0 0.0
    %1510 = vmatpush1.msra.mxu0 0.0
    %1511 = vmatprep.subr.mxu0 0.0
    %1512 = vmatpush1.msra.mxu0 0.0
    %1513 = vmatprep.subr.mxu0 0.0
    %1514 = vmatpush1.msra.mxu0 0.0
    %1515 = vmatprep.subr.mxu0 0.0
    %1516 = vmatpush1.msra.mxu0 0.0
    %1517 = vmatprep.subr.mxu0 0.0
    %1518 = vmatpush1.msra.mxu0 0.0
    %1519 = vmatprep.subr.mxu0 0.0
    %1520 = vmatpush1.msra.mxu0 0.0
    %1521 = vmatprep.subr.mxu0 0.0
    %1522 = vmatpush1.msra.mxu0 0.0
    %1523 = vmatprep.subr.mxu0 0.0
    %1524 = vmatpush1.msra.mxu0 0.0
    %1525 = vmatprep.subr.mxu0 0.0
    %1526 = vmatpush1.msra.mxu0 0.0
    %1527 = vmatprep.subr.mxu0 0.0
    %1528 = vmatpush1.msra.mxu0 0.0
    %1529 = vmatprep.subr.mxu0 0.0
    %1530 = vmatpush1.msra.mxu0 0.0
    %1531 = vmatprep.mubr.f32.mxu0 0.0
    %1532 = vmatmul.mubr.f32.gmra.mrb[0].mxu0 %v1465
    %v1533 = vpop.f32.mrb[0].mxu0
    %v1534 = vadd.f32 0.0, %v1533
    %v1535 = vpop.f32.mrb[0].mxu0
    %1536 = vdwg.mxu0
    %v1538 = vrot.slane %v1461, 6
    %1539 = vrot.lane.b32.xlu0 %v1538, 96
    %v1540 = vpop.permute.xlu0 %1539
    %v1541 = vsel %vm183, %v1540, 0
    %1543 = vmatprep.subr.mxu0 0.0
    %1544 = vmatpush1.msra.mxu0 %v364
    %1545 = vmatprep.subr.mxu0 0.0
    %1546 = vmatpush1.msra.mxu0 %v365
    %1547 = vmatprep.subr.mxu0 0.0
    %1548 = vmatpush1.msra.mxu0 %v366
    %1549 = vmatprep.subr.mxu0 0.0
    %1550 = vmatpush1.msra.mxu0 %v367
    %1551 = vmatprep.subr.mxu0 0.0
    %1552 = vmatpush1.msra.mxu0 0.0
    %1553 = vmatprep.subr.mxu0 0.0
    %1554 = vmatpush1.msra.mxu0 0.0
    %1555 = vmatprep.subr.mxu0 0.0
    %1556 = vmatpush1.msra.mxu0 0.0
    %1557 = vmatprep.subr.mxu0 0.0
    %1558 = vmatpush1.msra.mxu0 0.0
    %1559 = vmatprep.subr.mxu0 0.0
    %1560 = vmatpush1.msra.mxu0 0.0
    %1561 = vmatprep.subr.mxu0 0.0
    %1562 = vmatpush1.msra.mxu0 0.0
    %1563 = vmatprep.subr.mxu0 0.0
    %1564 = vmatpush1.msra.mxu0 0.0
    %1565 = vmatprep.subr.mxu0 0.0
    %1566 = vmatpush1.msra.mxu0 0.0
    %1567 = vmatprep.subr.mxu0 0.0
    %1568 = vmatpush1.msra.mxu0 0.0
    %1569 = vmatprep.subr.mxu0 0.0
    %1570 = vmatpush1.msra.mxu0 0.0
    %1571 = vmatprep.subr.mxu0 0.0
    %1572 = vmatpush1.msra.mxu0 0.0
    %1573 = vmatprep.subr.mxu0 0.0
    %1574 = vmatpush1.msra.mxu0 0.0
    %1575 = vmatprep.subr.mxu0 0.0
    %1576 = vmatpush1.msra.mxu0 0.0
    %1577 = vmatprep.subr.mxu0 0.0
    %1578 = vmatpush1.msra.mxu0 0.0
    %1579 = vmatprep.subr.mxu0 0.0
    %1580 = vmatpush1.msra.mxu0 0.0
    %1581 = vmatprep.subr.mxu0 0.0
    %1582 = vmatpush1.msra.mxu0 0.0
    %1583 = vmatprep.subr.mxu0 0.0
    %1584 = vmatpush1.msra.mxu0 0.0
    %1585 = vmatprep.subr.mxu0 0.0
    %1586 = vmatpush1.msra.mxu0 0.0
    %1587 = vmatprep.subr.mxu0 0.0
    %1588 = vmatpush1.msra.mxu0 0.0
    %1589 = vmatprep.subr.mxu0 0.0
    %1590 = vmatpush1.msra.mxu0 0.0
    %1591 = vmatprep.subr.mxu0 0.0
    %1592 = vmatpush1.msra.mxu0 0.0
    %1593 = vmatprep.subr.mxu0 0.0
    %1594 = vmatpush1.msra.mxu0 0.0
    %1595 = vmatprep.subr.mxu0 0.0
    %1596 = vmatpush1.msra.mxu0 0.0
    %1597 = vmatprep.subr.mxu0 0.0
    %1598 = vmatpush1.msra.mxu0 0.0
    %1599 = vmatprep.subr.mxu0 0.0
    %1600 = vmatpush1.msra.mxu0 0.0
    %1601 = vmatprep.subr.mxu0 0.0
    %1602 = vmatpush1.msra.mxu0 0.0
    %1603 = vmatprep.subr.mxu0 0.0
    %1604 = vmatpush1.msra.mxu0 0.0
    %1605 = vmatprep.subr.mxu0 0.0
    %1606 = vmatpush1.msra.mxu0 0.0
    %1607 = vmatprep.mubr.f32.mxu0 0.0
    %1608 = vmatmul.mubr.f32.gmra.mrb[0].mxu0 %v1541
    %v1609 = vpop.f32.mrb[0].mxu0
    %v1610 = vadd.f32 0.0, %v1609
    %v1611 = vpop.f32.mrb[0].mxu0
    %1612 = vdwg.mxu0
    %v1614 = vrot.slane %v1534, 6
    %v1616 = vadd.f32 %v263, %v1614
    %v1617 = vxor.u32 %v1616, 2147483648
    %v1618 = vmul.f32 %v1617, 1.442695
    %v1619 = vpow.pop %v1618
    %v1620 = vadd.f32 %v1619, 1.0
    %v1621 = vrcp.pop %v1620
    %v1622 = vmul.f32 1.0, %v1621
    %v1624 = vrot.slane %v1610, 4
    %1625 = vrot.lane.b32.xlu0 %v1624, 96
    %v1626 = vpop.permute.xlu0 %1625
    %v1628 = vadd.f32 %v257, %v1626
    %v1629 = vadd.f32 %v259, %v1626
    %v1630 = vxor.u32 %v1628, 2147483648
    %v1631 = vxor.u32 %v1629, 2147483648
    %v1632 = vmul.f32 %v1630, 1.442695
    %v1633 = vpow.pop %v1632
    %v1634 = vmul.f32 %v1631, 1.442695
    %v1635 = vpow.pop %v1634
    %v1636 = vadd.f32 %v1633, 1.0
    %v1637 = vadd.f32 %v1635, 1.0
    %v1638 = vrcp.pop %v1636
    %v1639 = vmul.f32 1.0, %v1638
    %v1640 = vrcp.pop %v1637
    %v1641 = vmul.f32 1.0, %v1640
    %v1642 = vadd.f32 %v1534, %v470
    %v1644 = vrot.slane %v1642, 6
    %1645 = vrot.lane.b32.xlu0 %v1644, 64
    %v1646 = vpop.permute.xlu0 %1645
    %v1648 = vmul.f32 %v1622, %v1646
    %1650 = vrot.lane.b32.xlu0 %v1648, 64
    %v1651 = vpop.permute.xlu0 %1650
    %v1653 = vadd.f32 %v263, %v1651
    %v1654 = vtanh.pop %v1653
    %v1655 = vadd.f32 %v1610, %v485
    %v1657 = vrot.slane %v1655, 4
    %1658 = vrot.lane.b32.xlu0 %v1657, 32
    %v1659 = vpop.permute.xlu0 %1658
    %v1661 = vmul.f32 %v1639, %v1659
    %1663 = vrot.lane.b32.xlu0 %v1661, 64
    %v1664 = vpop.permute.xlu0 %1663
    %v1666 = vadd.f32 %v259, %v1664
    %v1667 = vtanh.pop %v1666
    %v1669 = vrot.slane %v1654, 2
    %v1671 = vsub.f32 %v1446, %v1669
    %v1673 = vrot.slane %v1671, 6
    %1674 = vrot.lane.b32.xlu0 %v1673, 96
    %v1675 = vpop.permute.xlu0 %1674
    %v1677 = vmul.f32 %v1622, %v1675
    %1679 = vrot.lane.b32.xlu0 %v1677, 32
    %v1680 = vpop.permute.xlu0 %1679
    %v1682 = vadd.f32 %v1654, %v1680
    %v1684 = vrot.slane %v1667, 6
    %v1686 = vsub.f32 %v1461, %v1684
    %v1688 = vrot.slane %v1686, 2
    %1689 = vrot.lane.b32.xlu0 %v1688, 96
    %v1690 = vpop.permute.xlu0 %1689
    %v1692 = vmul.f32 %v1641, %v1690
    %1694 = vrot.lane.b32.xlu0 %v1692, 32
    %v1695 = vpop.permute.xlu0 %1694
    %v1697 = vadd.f32 %v1667, %v1695
    %v1699 = vrot.slane %v1682, 2
    %1700 = vrot.lane.b32.xlu0 %v1699, 64
    %v1701 = vpop.permute.xlu0 %1700
    %v1702 = vsel %vm183, %v1701, 0
    %1704 = vmatprep.subr.mxu0 0.0
    %1705 = vmatpush1.msra.mxu0 %v152
    %1706 = vmatprep.subr.mxu0 0.0
    %1707 = vmatpush1.msra.mxu0 %v153
    %1708 = vmatprep.subr.mxu0 0.0
    %1709 = vmatpush1.msra.mxu0 %v154
    %1710 = vmatprep.subr.mxu0 0.0
    %1711 = vmatpush1.msra.mxu0 %v155
    %1712 = vmatprep.subr.mxu0 0.0
    %1713 = vmatpush1.msra.mxu0 0.0
    %1714 = vmatprep.subr.mxu0 0.0
    %1715 = vmatpush1.msra.mxu0 0.0
    %1716 = vmatprep.subr.mxu0 0.0
    %1717 = vmatpush1.msra.mxu0 0.0
    %1718 = vmatprep.subr.mxu0 0.0
    %1719 = vmatpush1.msra.mxu0 0.0
    %1720 = vmatprep.subr.mxu0 0.0
    %1721 = vmatpush1.msra.mxu0 0.0
    %1722 = vmatprep.subr.mxu0 0.0
    %1723 = vmatpush1.msra.mxu0 0.0
    %1724 = vmatprep.subr.mxu0 0.0
    %1725 = vmatpush1.msra.mxu0 0.0
    %1726 = vmatprep.subr.mxu0 0.0
    %1727 = vmatpush1.msra.mxu0 0.0
    %1728 = vmatprep.subr.mxu0 0.0
    %1729 = vmatpush1.msra.mxu0 0.0
    %1730 = vmatprep.subr.mxu0 0.0
    %1731 = vmatpush1.msra.mxu0 0.0
    %1732 = vmatprep.subr.mxu0 0.0
    %1733 = vmatpush1.msra.mxu0 0.0
    %1734 = vmatprep.subr.mxu0 0.0
    %1735 = vmatpush1.msra.mxu0 0.0
    %1736 = vmatprep.subr.mxu0 0.0
    %1737 = vmatpush1.msra.mxu0 0.0
    %1738 = vmatprep.subr.mxu0 0.0
    %1739 = vmatpush1.msra.mxu0 0.0
    %1740 = vmatprep.subr.mxu0 0.0
    %1741 = vmatpush1.msra.mxu0 0.0
    %1742 = vmatprep.subr.mxu0 0.0
    %1743 = vmatpush1.msra.mxu0 0.0
    %1744 = vmatprep.subr.mxu0 0.0
    %1745 = vmatpush1.msra.mxu0 0.0
    %1746 = vmatprep.subr.mxu0 0.0
    %1747 = vmatpush1.msra.mxu0 0.0
    %1748 = vmatprep.subr.mxu0 0.0
    %1749 = vmatpush1.msra.mxu0 0.0
    %1750 = vmatprep.subr.mxu0 0.0
    %1751 = vmatpush1.msra.mxu0 0.0
    %1752 = vmatprep.subr.mxu0 0.0
    %1753 = vmatpush1.msra.mxu0 0.0
    %1754 = vmatprep.subr.mxu0 0.0
    %1755 = vmatpush1.msra.mxu0 0.0
    %1756 = vmatprep.subr.mxu0 0.0
    %1757 = vmatpush1.msra.mxu0 0.0
    %1758 = vmatprep.subr.mxu0 0.0
    %1759 = vmatpush1.msra.mxu0 0.0
    %1760 = vmatprep.subr.mxu0 0.0
    %1761 = vmatpush1.msra.mxu0 0.0
    %1762 = vmatprep.subr.mxu0 0.0
    %1763 = vmatpush1.msra.mxu0 0.0
    %1764 = vmatprep.subr.mxu0 0.0
    %1765 = vmatpush1.msra.mxu0 0.0
    %1766 = vmatprep.subr.mxu0 0.0
    %1767 = vmatpush1.msra.mxu0 0.0
    %1768 = vmatprep.mubr.f32.mxu0 0.0
    %1769 = vmatmul.mubr.f32.gmra.mrb[0].mxu0 %v1702
    %v1770 = vpop.f32.mrb[0].mxu0
    %v1771 = vadd.f32 0.0, %v1770
    %v1772 = vpop.f32.mrb[0].mxu0
    %1773 = vdwg.mxu0
    %v1775 = vrot.slane %v1697, 4
    %1776 = vrot.lane.b32.xlu0 %v1775, 96
    %v1777 = vpop.permute.xlu0 %1776
    %v1778 = vsel %vm183, %v1777, 0
    %1780 = vmatprep.subr.mxu0 0.0
    %1781 = vmatpush1.msra.mxu0 %v364
    %1782 = vmatprep.subr.mxu0 0.0
    %1783 = vmatpush1.msra.mxu0 %v365
    %1784 = vmatprep.subr.mxu0 0.0
    %1785 = vmatpush1.msra.mxu0 %v366
    %1786 = vmatprep.subr.mxu0 0.0
    %1787 = vmatpush1.msra.mxu0 %v367
    %1788 = vmatprep.subr.mxu0 0.0
    %1789 = vmatpush1.msra.mxu0 0.0
    %1790 = vmatprep.subr.mxu0 0.0
    %1791 = vmatpush1.msra.mxu0 0.0
    %1792 = vmatprep.subr.mxu0 0.0
    %1793 = vmatpush1.msra.mxu0 0.0
    %1794 = vmatprep.subr.mxu0 0.0
    %1795 = vmatpush1.msra.mxu0 0.0
    %1796 = vmatprep.subr.mxu0 0.0
    %1797 = vmatpush1.msra.mxu0 0.0
    %1798 = vmatprep.subr.mxu0 0.0
    %1799 = vmatpush1.msra.mxu0 0.0
    %1800 = vmatprep.subr.mxu0 0.0
    %1801 = vmatpush1.msra.mxu0 0.0
    %1802 = vmatprep.subr.mxu0 0.0
    %1803 = vmatpush1.msra.mxu0 0.0
    %1804 = vmatprep.subr.mxu0 0.0
    %1805 = vmatpush1.msra.mxu0 0.0
    %1806 = vmatprep.subr.mxu0 0.0
    %1807 = vmatpush1.msra.mxu0 0.0
    %1808 = vmatprep.subr.mxu0 0.0
    %1809 = vmatpush1.msra.mxu0 0.0
    %1810 = vmatprep.subr.mxu0 0.0
    %1811 = vmatpush1.msra.mxu0 0.0
    %1812 = vmatprep.subr.mxu0 0.0
    %1813 = vmatpush1.msra.mxu0 0.0
    %1814 = vmatprep.subr.mxu0 0.0
    %1815 = vmatpush1.msra.mxu0 0.0
    %1816 = vmatprep.subr.mxu0 0.0
    %1817 = vmatpush1.msra.mxu0 0.0
    %1818 = vmatprep.subr.mxu0 0.0
    %1819 = vmatpush1.msra.mxu0 0.0
    %1820 = vmatprep.subr.mxu0 0.0
    %1821 = vmatpush1.msra.mxu0 0.0
    %1822 = vmatprep.subr.mxu0 0.0
    %1823 = vmatpush1.msra.mxu0 0.0
    %1824 = vmatprep.subr.mxu0 0.0
    %1825 = vmatpush1.msra.mxu0 0.0
    %1826 = vmatprep.subr.mxu0 0.0
    %1827 = vmatpush1.msra.mxu0 0.0
    %1828 = vmatprep.subr.mxu0 0.0
    %1829 = vmatpush1.msra.mxu0 0.0
    %1830 = vmatprep.subr.mxu0 0.0
    %1831 = vmatpush1.msra.mxu0 0.0
    %1832 = vmatprep.subr.mxu0 0.0
    %1833 = vmatpush1.msra.mxu0 0.0
    %1834 = vmatprep.subr.mxu0 0.0
    %1835 = vmatpush1.msra.mxu0 0.0
    %1836 = vmatprep.subr.mxu0 0.0
    %1837 = vmatpush1.msra.mxu0 0.0
    %1838 = vmatprep.subr.mxu0 0.0
    %1839 = vmatpush1.msra.mxu0 0.0
    %1840 = vmatprep.subr.mxu0 0.0
    %1841 = vmatpush1.msra.mxu0 0.0
    %1842 = vmatprep.subr.mxu0 0.0
    %1843 = vmatpush1.msra.mxu0 0.0
    %1844 = vmatprep.mubr.f32.mxu0 0.0
    %1845 = vmatmul.mubr.f32.gmra.mrb[0].mxu0 %v1778
    %v1846 = vpop.f32.mrb[0].mxu0
    %v1847 = vadd.f32 0.0, %v1846
    %v1848 = vpop.f32.mrb[0].mxu0
    %1849 = vdwg.mxu0
    %v1851 = vrot.slane %v1771, 4
    %v1853 = vadd.f32 %v263, %v1851
    %v1854 = vxor.u32 %v1853, 2147483648
    %v1855 = vmul.f32 %v1854, 1.442695
    %v1856 = vpow.pop %v1855
    %v1857 = vadd.f32 %v1856, 1.0
    %v1858 = vrcp.pop %v1857
    %v1859 = vmul.f32 1.0, %v1858
    %v1861 = vrot.slane %v1847, 6
    %1862 = vrot.lane.b32.xlu0 %v1861, 96
    %v1863 = vpop.permute.xlu0 %1862
    %v1865 = vadd.f32 %v257, %v1863
    %v1866 = vadd.f32 %v259, %v1863
    %v1867 = vxor.u32 %v1865, 2147483648
    %v1868 = vxor.u32 %v1866, 2147483648
    %v1869 = vmul.f32 %v1867, 1.442695
    %v1870 = vpow.pop %v1869
    %v1871 = vmul.f32 %v1868, 1.442695
    %v1872 = vpow.pop %v1871
    %v1873 = vadd.f32 %v1870, 1.0
    %v1874 = vadd.f32 %v1872, 1.0
    %v1875 = vrcp.pop %v1873
    %v1876 = vmul.f32 1.0, %v1875
    %v1877 = vrcp.pop %v1874
    %v1878 = vmul.f32 1.0, %v1877
    %v1879 = vadd.f32 %v1771, %v470
    %v1881 = vrot.slane %v1879, 4
    %1882 = vrot.lane.b32.xlu0 %v1881, 64
    %v1883 = vpop.permute.xlu0 %1882
    %v1885 = vmul.f32 %v1859, %v1883
    %1887 = vrot.lane.b32.xlu0 %v1885, 64
    %v1888 = vpop.permute.xlu0 %1887
    %v1890 = vadd.f32 %v263, %v1888
    %v1891 = vtanh.pop %v1890
    %v1892 = vadd.f32 %v1847, %v485
    %v1894 = vrot.slane %v1892, 6
    %1895 = vrot.lane.b32.xlu0 %v1894, 32
    %v1896 = vpop.permute.xlu0 %1895
    %v1898 = vmul.f32 %v1876, %v1896
    %1900 = vrot.lane.b32.xlu0 %v1898, 64
    %v1901 = vpop.permute.xlu0 %1900
    %v1903 = vadd.f32 %v259, %v1901
    %v1904 = vtanh.pop %v1903
    %v1906 = vrot.slane %v1891, 2
    %v1908 = vsub.f32 %v1682, %v1906
    %v1910 = vrot.slane %v1908, 6
    %1911 = vrot.lane.b32.xlu0 %v1910, 96
    %v1912 = vpop.permute.xlu0 %1911
    %v1914 = vmul.f32 %v1859, %v1912
    %1916 = vrot.lane.b32.xlu0 %v1914, 32
    %v1917 = vpop.permute.xlu0 %1916
    %v1919 = vadd.f32 %v1891, %v1917
    %v1921 = vrot.slane %v1904, 6
    %v1923 = vsub.f32 %v1697, %v1921
    %v1925 = vrot.slane %v1923, 2
    %1926 = vrot.lane.b32.xlu0 %v1925, 96
    %v1927 = vpop.permute.xlu0 %1926
    %v1929 = vmul.f32 %v1878, %v1927
    %1931 = vrot.lane.b32.xlu0 %v1929, 32
    %v1932 = vpop.permute.xlu0 %1931
    %v1934 = vadd.f32 %v1904, %v1932
    %v1936 = vrot.slane %v1919, 4
    %1937 = vrot.lane.b32.xlu0 %v1936, 64
    %v1938 = vpop.permute.xlu0 %1937
    %v1939 = vsel %vm183, %v1938, 0
    %1941 = vmatprep.subr.mxu0 0.0
    %1942 = vmatpush1.msra.mxu0 %v152
    %1943 = vmatprep.subr.mxu0 0.0
    %1944 = vmatpush1.msra.mxu0 %v153
    %1945 = vmatprep.subr.mxu0 0.0
    %1946 = vmatpush1.msra.mxu0 %v154
    %1947 = vmatprep.subr.mxu0 0.0
    %1948 = vmatpush1.msra.mxu0 %v155
    %1949 = vmatprep.subr.mxu0 0.0
    %1950 = vmatpush1.msra.mxu0 0.0
    %1951 = vmatprep.subr.mxu0 0.0
    %1952 = vmatpush1.msra.mxu0 0.0
    %1953 = vmatprep.subr.mxu0 0.0
    %1954 = vmatpush1.msra.mxu0 0.0
    %1955 = vmatprep.subr.mxu0 0.0
    %1956 = vmatpush1.msra.mxu0 0.0
    %1957 = vmatprep.subr.mxu0 0.0
    %1958 = vmatpush1.msra.mxu0 0.0
    %1959 = vmatprep.subr.mxu0 0.0
    %1960 = vmatpush1.msra.mxu0 0.0
    %1961 = vmatprep.subr.mxu0 0.0
    %1962 = vmatpush1.msra.mxu0 0.0
    %1963 = vmatprep.subr.mxu0 0.0
    %1964 = vmatpush1.msra.mxu0 0.0
    %1965 = vmatprep.subr.mxu0 0.0
    %1966 = vmatpush1.msra.mxu0 0.0
    %1967 = vmatprep.subr.mxu0 0.0
    %1968 = vmatpush1.msra.mxu0 0.0
    %1969 = vmatprep.subr.mxu0 0.0
    %1970 = vmatpush1.msra.mxu0 0.0
    %1971 = vmatprep.subr.mxu0 0.0
    %1972 = vmatpush1.msra.mxu0 0.0
    %1973 = vmatprep.subr.mxu0 0.0
    %1974 = vmatpush1.msra.mxu0 0.0
    %1975 = vmatprep.subr.mxu0 0.0
    %1976 = vmatpush1.msra.mxu0 0.0
    %1977 = vmatprep.subr.mxu0 0.0
    %1978 = vmatpush1.msra.mxu0 0.0
    %1979 = vmatprep.subr.mxu0 0.0
    %1980 = vmatpush1.msra.mxu0 0.0
    %1981 = vmatprep.subr.mxu0 0.0
    %1982 = vmatpush1.msra.mxu0 0.0
    %1983 = vmatprep.subr.mxu0 0.0
    %1984 = vmatpush1.msra.mxu0 0.0
    %1985 = vmatprep.subr.mxu0 0.0
    %1986 = vmatpush1.msra.mxu0 0.0
    %1987 = vmatprep.subr.mxu0 0.0
    %1988 = vmatpush1.msra.mxu0 0.0
    %1989 = vmatprep.subr.mxu0 0.0
    %1990 = vmatpush1.msra.mxu0 0.0
    %1991 = vmatprep.subr.mxu0 0.0
    %1992 = vmatpush1.msra.mxu0 0.0
    %1993 = vmatprep.subr.mxu0 0.0
    %1994 = vmatpush1.msra.mxu0 0.0
    %1995 = vmatprep.subr.mxu0 0.0
    %1996 = vmatpush1.msra.mxu0 0.0
    %1997 = vmatprep.subr.mxu0 0.0
    %1998 = vmatpush1.msra.mxu0 0.0
    %1999 = vmatprep.subr.mxu0 0.0
    %2000 = vmatpush1.msra.mxu0 0.0
    %2001 = vmatprep.subr.mxu0 0.0
    %2002 = vmatpush1.msra.mxu0 0.0
    %2003 = vmatprep.subr.mxu0 0.0
    %2004 = vmatpush1.msra.mxu0 0.0
    %2005 = vmatprep.mubr.f32.mxu0 0.0
    %2006 = vmatmul.mubr.f32.gmra.mrb[0].mxu0 %v1939
    %v2007 = vpop.f32.mrb[0].mxu0
    %v2008 = vadd.f32 0.0, %v2007
    %v2009 = vpop.f32.mrb[0].mxu0
    %2010 = vdwg.mxu0
    %v2012 = vrot.slane %v1934, 2
    %2013 = vrot.lane.b32.xlu0 %v2012, 96
    %v2014 = vpop.permute.xlu0 %2013
    %v2015 = vsel %vm183, %v2014, 0
    %2017 = vmatprep.subr.mxu0 0.0
    %2018 = vmatpush1.msra.mxu0 %v364
    %2019 = vmatprep.subr.mxu0 0.0
    %2020 = vmatpush1.msra.mxu0 %v365
    %2021 = vmatprep.subr.mxu0 0.0
    %2022 = vmatpush1.msra.mxu0 %v366
    %2023 = vmatprep.subr.mxu0 0.0
    %2024 = vmatpush1.msra.mxu0 %v367
    %2025 = vmatprep.subr.mxu0 0.0
    %2026 = vmatpush1.msra.mxu0 0.0
    %2027 = vmatprep.subr.mxu0 0.0
    %2028 = vmatpush1.msra.mxu0 0.0
    %2029 = vmatprep.subr.mxu0 0.0
    %2030 = vmatpush1.msra.mxu0 0.0
    %2031 = vmatprep.subr.mxu0 0.0
    %2032 = vmatpush1.msra.mxu0 0.0
    %2033 = vmatprep.subr.mxu0 0.0
    %2034 = vmatpush1.msra.mxu0 0.0
    %2035 = vmatprep.subr.mxu0 0.0
    %2036 = vmatpush1.msra.mxu0 0.0
    %2037 = vmatprep.subr.mxu0 0.0
    %2038 = vmatpush1.msra.mxu0 0.0
    %2039 = vmatprep.subr.mxu0 0.0
    %2040 = vmatpush1.msra.mxu0 0.0
    %2041 = vmatprep.subr.mxu0 0.0
    %2042 = vmatpush1.msra.mxu0 0.0
    %2043 = vmatprep.subr.mxu0 0.0
    %2044 = vmatpush1.msra.mxu0 0.0
    %2045 = vmatprep.subr.mxu0 0.0
    %2046 = vmatpush1.msra.mxu0 0.0
    %2047 = vmatprep.subr.mxu0 0.0
    %2048 = vmatpush1.msra.mxu0 0.0
    %2049 = vmatprep.subr.mxu0 0.0
    %2050 = vmatpush1.msra.mxu0 0.0
    %2051 = vmatprep.subr.mxu0 0.0
    %2052 = vmatpush1.msra.mxu0 0.0
    %2053 = vmatprep.subr.mxu0 0.0
    %2054 = vmatpush1.msra.mxu0 0.0
    %2055 = vmatprep.subr.mxu0 0.0
    %2056 = vmatpush1.msra.mxu0 0.0
    %2057 = vmatprep.subr.mxu0 0.0
    %2058 = vmatpush1.msra.mxu0 0.0
    %2059 = vmatprep.subr.mxu0 0.0
    %2060 = vmatpush1.msra.mxu0 0.0
    %2061 = vmatprep.subr.mxu0 0.0
    %2062 = vmatpush1.msra.mxu0 0.0
    %2063 = vmatprep.subr.mxu0 0.0
    %2064 = vmatpush1.msra.mxu0 0.0
    %2065 = vmatprep.subr.mxu0 0.0
    %2066 = vmatpush1.msra.mxu0 0.0
    %2067 = vmatprep.subr.mxu0 0.0
    %2068 = vmatpush1.msra.mxu0 0.0
    %2069 = vmatprep.subr.mxu0 0.0
    %2070 = vmatpush1.msra.mxu0 0.0
    %2071 = vmatprep.subr.mxu0 0.0
    %2072 = vmatpush1.msra.mxu0 0.0
    %2073 = vmatprep.subr.mxu0 0.0
    %2074 = vmatpush1.msra.mxu0 0.0
    %2075 = vmatprep.subr.mxu0 0.0
    %2076 = vmatpush1.msra.mxu0 0.0
    %2077 = vmatprep.subr.mxu0 0.0
    %2078 = vmatpush1.msra.mxu0 0.0
    %2079 = vmatprep.subr.mxu0 0.0
    %2080 = vmatpush1.msra.mxu0 0.0
    %2081 = vmatprep.mubr.f32.mxu0 0.0
    %2082 = vmatmul.mubr.f32.gmra.mrb[0].mxu0 %v2015
    %v2083 = vpop.f32.mrb[0].mxu0
    %v2084 = vadd.f32 0.0, %v2083
    %v2085 = vpop.f32.mrb[0].mxu0
    %2086 = vdwg.mxu0
    %v2088 = vrot.slane %v2008, 2
    %v2090 = vadd.f32 %v263, %v2088
    %v2091 = vxor.u32 %v2090, 2147483648
    %v2092 = vmul.f32 %v2091, 1.442695
    %v2093 = vpow.pop %v2092
    %v2094 = vadd.f32 %v2093, 1.0
    %v2095 = vrcp.pop %v2094
    %v2096 = vmul.f32 1.0, %v2095
    %2098 = vrot.lane.b32.xlu0 %v2084, 96
    %v2099 = vpop.permute.xlu0 %2098
    %v2101 = vadd.f32 %v257, %v2099
    %v2102 = vadd.f32 %v259, %v2099
    %v2103 = vxor.u32 %v2101, 2147483648
    %v2104 = vxor.u32 %v2102, 2147483648
    %v2105 = vmul.f32 %v2103, 1.442695
    %v2106 = vpow.pop %v2105
    %v2107 = vmul.f32 %v2104, 1.442695
    %v2108 = vpow.pop %v2107
    %v2109 = vadd.f32 %v2106, 1.0
    %v2110 = vadd.f32 %v2108, 1.0
    %v2111 = vrcp.pop %v2109
    %v2112 = vmul.f32 1.0, %v2111
    %v2113 = vrcp.pop %v2110
    %v2114 = vmul.f32 1.0, %v2113
    %v2115 = vadd.f32 %v2008, %v470
    %v2117 = vrot.slane %v2115, 2
    %2118 = vrot.lane.b32.xlu0 %v2117, 64
    %v2119 = vpop.permute.xlu0 %2118
    %v2121 = vmul.f32 %v2096, %v2119
    %2123 = vrot.lane.b32.xlu0 %v2121, 64
    %v2124 = vpop.permute.xlu0 %2123
    %v2126 = vadd.f32 %v263, %v2124
    %v2127 = vtanh.pop %v2126
    %v2128 = vadd.f32 %v2084, %v485
    %2130 = vrot.lane.b32.xlu0 %v2128, 32
    %v2131 = vpop.permute.xlu0 %2130
    %v2133 = vmul.f32 %v2112, %v2131
    %2135 = vrot.lane.b32.xlu0 %v2133, 64
    %v2136 = vpop.permute.xlu0 %2135
    %v2138 = vadd.f32 %v259, %v2136
    %v2139 = vtanh.pop %v2138
    %v2141 = vrot.slane %v2127, 2
    %v2143 = vsub.f32 %v1919, %v2141
    %v2145 = vrot.slane %v2143, 6
    %2146 = vrot.lane.b32.xlu0 %v2145, 96
    %v2147 = vpop.permute.xlu0 %2146
    %v2149 = vmul.f32 %v2096, %v2147
    %2151 = vrot.lane.b32.xlu0 %v2149, 32
    %v2152 = vpop.permute.xlu0 %2151
    %v2154 = vadd.f32 %v2127, %v2152
    %v2156 = vrot.slane %v2139, 6
    %v2158 = vsub.f32 %v1934, %v2156
    %v2160 = vrot.slane %v2158, 2
    %2161 = vrot.lane.b32.xlu0 %v2160, 96
    %v2162 = vpop.permute.xlu0 %2161
    %v2164 = vmul.f32 %v2114, %v2162
    %2166 = vrot.lane.b32.xlu0 %v2164, 32
    %v2167 = vpop.permute.xlu0 %2166
    %v2169 = vadd.f32 %v2139, %v2167
    %2171 = vrot.lane.b32.xlu0 %v2169, 96
    %v2172 = vpop.permute.xlu0 %2171
    %v2173 = vsel %vm183, %v2172, 0
    %2175 = vmatprep.subr.mxu0 0.0
    %2176 = vmatpush1.msra.mxu0 %v167
    %2177 = vmatprep.subr.mxu0 0.0
    %2178 = vmatpush1.msra.mxu0 %v168
    %2179 = vmatprep.subr.mxu0 0.0
    %2180 = vmatpush1.msra.mxu0 %v169
    %2181 = vmatprep.subr.mxu0 0.0
    %2182 = vmatpush1.msra.mxu0 %v170
    %2183 = vmatprep.subr.mxu0 0.0
    %2184 = vmatpush1.msra.mxu0 0.0
    %2185 = vmatprep.subr.mxu0 0.0
    %2186 = vmatpush1.msra.mxu0 0.0
    %2187 = vmatprep.subr.mxu0 0.0
    %2188 = vmatpush1.msra.mxu0 0.0
    %2189 = vmatprep.subr.mxu0 0.0
    %2190 = vmatpush1.msra.mxu0 0.0
    %2191 = vmatprep.subr.mxu0 0.0
    %2192 = vmatpush1.msra.mxu0 0.0
    %2193 = vmatprep.subr.mxu0 0.0
    %2194 = vmatpush1.msra.mxu0 0.0
    %2195 = vmatprep.subr.mxu0 0.0
    %2196 = vmatpush1.msra.mxu0 0.0
    %2197 = vmatprep.subr.mxu0 0.0
    %2198 = vmatpush1.msra.mxu0 0.0
    %2199 = vmatprep.subr.mxu0 0.0
    %2200 = vmatpush1.msra.mxu0 0.0
    %2201 = vmatprep.subr.mxu0 0.0
    %2202 = vmatpush1.msra.mxu0 0.0
    %2203 = vmatprep.subr.mxu0 0.0
    %2204 = vmatpush1.msra.mxu0 0.0
    %2205 = vmatprep.subr.mxu0 0.0
    %2206 = vmatpush1.msra.mxu0 0.0
    %2207 = vmatprep.subr.mxu0 0.0
    %2208 = vmatpush1.msra.mxu0 0.0
    %2209 = vmatprep.subr.mxu0 0.0
    %2210 = vmatpush1.msra.mxu0 0.0
    %2211 = vmatprep.subr.mxu0 0.0
    %2212 = vmatpush1.msra.mxu0 0.0
    %2213 = vmatprep.subr.mxu0 0.0
    %2214 = vmatpush1.msra.mxu0 0.0
    %2215 = vmatprep.subr.mxu0 0.0
    %2216 = vmatpush1.msra.mxu0 0.0
    %2217 = vmatprep.subr.mxu0 0.0
    %2218 = vmatpush1.msra.mxu0 0.0
    %2219 = vmatprep.subr.mxu0 0.0
    %2220 = vmatpush1.msra.mxu0 0.0
    %2221 = vmatprep.subr.mxu0 0.0
    %2222 = vmatpush1.msra.mxu0 0.0
    %2223 = vmatprep.subr.mxu0 0.0
    %2224 = vmatpush1.msra.mxu0 0.0
    %2225 = vmatprep.subr.mxu0 0.0
    %2226 = vmatpush1.msra.mxu0 0.0
    %2227 = vmatprep.subr.mxu0 0.0
    %2228 = vmatpush1.msra.mxu0 0.0
    %2229 = vmatprep.subr.mxu0 0.0
    %2230 = vmatpush1.msra.mxu0 0.0
    %2231 = vmatprep.subr.mxu0 0.0
    %2232 = vmatpush1.msra.mxu0 0.0
    %2233 = vmatprep.subr.mxu0 0.0
    %2234 = vmatpush1.msra.mxu0 0.0
    %2235 = vmatprep.subr.mxu0 0.0
    %2236 = vmatpush1.msra.mxu0 0.0
    %2237 = vmatprep.subr.mxu0 0.0
    %2238 = vmatpush1.msra.mxu0 0.0
    %2239 = vmatprep.mubr.f32.mxu0 0.0
    %2240 = vmatmul.mubr.f32.gmra.mrb[0].mxu0 %v2173
    %v2241 = vpop.f32.mrb[0].mxu0
    %v2242 = vadd.f32 0.0, %v2241
    %v2243 = vpop.f32.mrb[0].mxu0
    %2244 = vdwg.mxu0
    %v2246 = vrot.slane %v2154, 6
    %2247 = vrot.lane.b32.xlu0 %v2246, 64
    %v2248 = vpop.permute.xlu0 %2247
    %v2249 = vsel %vm183, %v2248, 0
    %2251 = vmatprep.subr.mxu0 0.0
    %2252 = vmatpush1.msra.mxu0 %v163
    %2253 = vmatprep.subr.mxu0 0.0
    %2254 = vmatpush1.msra.mxu0 %v164
    %2255 = vmatprep.subr.mxu0 0.0
    %2256 = vmatpush1.msra.mxu0 %v165
    %2257 = vmatprep.subr.mxu0 0.0
    %2258 = vmatpush1.msra.mxu0 %v166
    %2259 = vmatprep.subr.mxu0 0.0
    %2260 = vmatpush1.msra.mxu0 0.0
    %2261 = vmatprep.subr.mxu0 0.0
    %2262 = vmatpush1.msra.mxu0 0.0
    %2263 = vmatprep.subr.mxu0 0.0
    %2264 = vmatpush1.msra.mxu0 0.0
    %2265 = vmatprep.subr.mxu0 0.0
    %2266 = vmatpush1.msra.mxu0 0.0
    %2267 = vmatprep.subr.mxu0 0.0
    %2268 = vmatpush1.msra.mxu0 0.0
    %2269 = vmatprep.subr.mxu0 0.0
    %2270 = vmatpush1.msra.mxu0 0.0
    %2271 = vmatprep.subr.mxu0 0.0
    %2272 = vmatpush1.msra.mxu0 0.0
    %2273 = vmatprep.subr.mxu0 0.0
    %2274 = vmatpush1.msra.mxu0 0.0
    %2275 = vmatprep.subr.mxu0 0.0
    %2276 = vmatpush1.msra.mxu0 0.0
    %2277 = vmatprep.subr.mxu0 0.0
    %2278 = vmatpush1.msra.mxu0 0.0
    %2279 = vmatprep.subr.mxu0 0.0
    %2280 = vmatpush1.msra.mxu0 0.0
    %2281 = vmatprep.subr.mxu0 0.0
    %2282 = vmatpush1.msra.mxu0 0.0
    %2283 = vmatprep.subr.mxu0 0.0
    %2284 = vmatpush1.msra.mxu0 0.0
    %2285 = vmatprep.subr.mxu0 0.0
    %2286 = vmatpush1.msra.mxu0 0.0
    %2287 = vmatprep.subr.mxu0 0.0
    %2288 = vmatpush1.msra.mxu0 0.0
    %2289 = vmatprep.subr.mxu0 0.0
    %2290 = vmatpush1.msra.mxu0 0.0
    %2291 = vmatprep.subr.mxu0 0.0
    %2292 = vmatpush1.msra.mxu0 0.0
    %2293 = vmatprep.subr.mxu0 0.0
    %2294 = vmatpush1.msra.mxu0 0.0
    %2295 = vmatprep.subr.mxu0 0.0
    %2296 = vmatpush1.msra.mxu0 0.0
    %2297 = vmatprep.subr.mxu0 0.0
    %2298 = vmatpush1.msra.mxu0 0.0
    %2299 = vmatprep.subr.mxu0 0.0
    %2300 = vmatpush1.msra.mxu0 0.0
    %2301 = vmatprep.subr.mxu0 0.0
    %2302 = vmatpush1.msra.mxu0 0.0
    %2303 = vmatprep.subr.mxu0 0.0
    %2304 = vmatpush1.msra.mxu0 0.0
    %2305 = vmatprep.subr.mxu0 0.0
    %2306 = vmatpush1.msra.mxu0 0.0
    %2307 = vmatprep.subr.mxu0 0.0
    %2308 = vmatpush1.msra.mxu0 0.0
    %2309 = vmatprep.subr.mxu0 0.0
    %2310 = vmatpush1.msra.mxu0 0.0
    %2311 = vmatprep.subr.mxu0 0.0
    %2312 = vmatpush1.msra.mxu0 0.0
    %2313 = vmatprep.subr.mxu0 0.0
    %2314 = vmatpush1.msra.mxu0 0.0
    %2315 = vmatprep.mubr.f32.mxu0 0.0
    %2316 = vmatmul.mubr.f32.gmra.mrb[0].mxu0 %v2249
    %v2317 = vpop.f32.mrb[0].mxu0
    %v2318 = vadd.f32 %v2242, %v2317
    %v2319 = vpop.f32.mrb[0].mxu0
    %2320 = vdwg.mxu0
    %v2321 = vadd.f32 %v2318, %v171
    %vm2322 = vcmask 17408
    %2323 = vst.msk [vmem:[#allocation5] sm:$0x3] %vm2322, %v2321
    // Predicated region
    $region18: #{bert_sentiment_forward.1} parent=1 // pred_check
      _
    $region19: #{bert_sentiment_forward.1} parent=1 // pred_check_branch
      %2325 = sbr.rel (0) target = $region21
    $region20: #{bert_sentiment_forward.1} parent=1 // pred_region
      %s2327 = ssub.s32 32, 32
      %2328 = vsyncadd [#allocation4], %s2327
      %s2330 = sshll.u32 [#allocation5], 4
      %s2331 = int_to_ptr.vmem [resolvable:$true] %s2330
      %2333 = dma.vmem_to_hbm [thread:$0]  %s2331, 32, %s3, [#allocation4]
    $region21: #{bert_sentiment_forward.1} parent=1 // pred_fallthru
      _
    // Predicated region
    $region22: #{bert_sentiment_forward.1} parent=1 // pred_check
      _
    $region23: #{bert_sentiment_forward.1} parent=1 // pred_check_branch
      %2335 = sbr.rel (0) target = $region25
    $region24: #{bert_sentiment_forward.1} parent=1 // pred_region
      %2336 = dma.done [#allocation4], 32
    $region25: #{bert_sentiment_forward.1} parent=1 // pred_fallthru
      _
    %2337 = vsyncpa [#allocation3], 1
    %2338 = vsyncpa [#allocation4], 1

</llo_original>
